<compile_context>
chip_gen: v7x
topology: tpu7x:2x2x1
jax: 0.10.0
libtpu: 0.0.40
codegen_flags: <defaults>
</compile_context>

<pallas_src>
import jax
import jax.numpy as jnp
from jax import lax
from jax.experimental import pallas as pl
from jax.experimental.pallas import tpu as pltpu

# ---------------- hyper-parameters (small, consistent with the module) -------
P = 2            # num_metapaths
H = 4            # num_heads
D = 32           # out_dim
HD = H * D       # 128  (lane aligned)
L = 3            # metapath instance length
E = 16           # edges per metapath subgraph
NN = 16          # nodes per metapath subgraph
T = 8            # number of target nodes
N_GLOBAL = 24    # rows of the global feature table
MAX_ITER = 3


# ------------------------------ fused kernel ----------------------------------
# TODO(synk): reference builds nn.GRU(out_dim, H*out_dim) but feeds H*out_dim-wide
# features (shape-inconsistent in PyTorch); the self-consistent 'linear' variant is
# implemented: hidden = mean_L(edata) @ W, W: (HD, HD), then cross-head normalize.
def _fused_kernel(feat_ref, w_ref, g_ref, gath0_ref, sg_ref, sb_ref,
                  u_ref, abc_ref, mhead_ref, mpos_ref):
    # ---- constant head-mixing masks, generated in-kernel into bf16 scratch ----
    ri = lax.broadcasted_iota(jnp.int32, (HD, HD), 0).astype(jnp.float32)
    ci = lax.broadcasted_iota(jnp.int32, (HD, HD), 1).astype(jnp.float32)
    rh = jnp.floor(ri * (1.0 / D))
    ch = jnp.floor(ci * (1.0 / D))
    # m_head[i,j] = (i//D == j//D): within-head sum / broadcast over the head's lanes
    mhead_ref[...] = jnp.where(rh == ch, 1.0, 0.0).astype(jnp.bfloat16)
    # m_pos[i,j] = (i%D == j%D): cross-head sum at fixed d (F.normalize(..., dim=1))
    mpos_ref[...] = jnp.where((ri - D * rh) == (ci - D * ch), 1.0, 0.0
                              ).astype(jnp.bfloat16)

    def head_norm(v):
        # torch F.normalize(v.view(-1,H,D), p=2, dim=1): L2 across heads per d
        sq = jnp.dot((v * v).astype(jnp.bfloat16), mpos_ref[...],
                     preferred_element_type=jnp.float32)
        return v * lax.rsqrt(jnp.maximum(sq, 1e-24))

    feats = feat_ref[...]                                              # (N, HD) f32

    # ---- metapath-instance encoder, all P metapaths batched ----
    # featw[:, p*HD:(p+1)*HD] = features @ W[p]      (one (N,HD)@(HD,P*HD) matmul)
    featw = jnp.dot(feats, w_ref[...], preferred_element_type=jnp.float32)
    featw_stack = jnp.concatenate(
        [featw[:, p * HD:(p + 1) * HD] for p in range(P)], axis=0)     # (P*N, HD)
    # block-diag mean matrices -> hidden[p] = (G[p] @ features) @ W[p]
    hidden_all = jnp.dot(g_ref[...], featw_stack,
                         preferred_element_type=jnp.float32)           # (P*E, HD)
    efts = head_norm(hidden_all)

    # it==0 dst-node features + residual base via one one-hot gather matmul
    g0 = head_norm(jnp.dot(gath0_ref[...], feats,
                           preferred_element_type=jnp.float32))        # (P*E+T, HD)
    ftdst0 = g0[:P * E]
    base0 = g0[P * E:]

    u = None
    for it in range(MAX_ITER):
        if it == 0:
            ftdst = ftdst0
        else:
            # zeros.at[target].set(u) then gather at dst  ==  one-hot matmul (MXU)
            ftdst = jnp.dot(sg_ref[...], u.astype(jnp.bfloat16),
                            preferred_element_type=jnp.float32)        # (P*E, HD)
        prod = efts * ftdst                                            # (P*E, HD)
        # per-head dot-product sim, broadcast across each head's D lanes (MXU)
        sim_b = jnp.dot(prod.astype(jnp.bfloat16), mhead_ref[...],
                        preferred_element_type=jnp.float32)
        mmax = jnp.max(sim_b, axis=1, keepdims=True)
        ex = jnp.exp(sim_b - mmax)
        denom = jnp.sum(ex, axis=1, keepdims=True) * (1.0 / D)
        a_b = ex / denom                                               # softmax over heads
        if it == MAX_ITER - 1:
            abc_ref[...] = a_b                                         # store in-branch
        msg = efts * a_b
        # scatter-add edges -> target nodes, all metapaths in one block-diag matmul
        v_all = jnp.dot(sb_ref[...], msg.astype(jnp.bfloat16),
                        preferred_element_type=jnp.float32) + 1e-15    # (P*T, HD)
        outs = head_norm(v_all)
        # beta = softmax([0]*P) -> uniform 1/P
        h = outs[0:T]
        for p in range(1, P):
            h = h + outs[p * T:(p + 1) * T]
        h = h * (1.0 / P)
        base = base0 if it == 0 else u
        u = head_norm(base + h)

    u_ref[...] = u


def _fused_call(features, w_cat, g_blk, gath0, scat_gather, scat_blk):
    return pl.pallas_call(
        _fused_kernel,
        out_shape=(
            jax.ShapeDtypeStruct((T, HD), jnp.float32),
            jax.ShapeDtypeStruct((P * E, HD), jnp.float32),
        ),
        grid=(1,),
        in_specs=[
            pl.BlockSpec((N_GLOBAL, HD), lambda i: (0, 0)),
            pl.BlockSpec((HD, P * HD), lambda i: (0, 0)),
            pl.BlockSpec((P * E, P * N_GLOBAL), lambda i: (0, 0)),
            pl.BlockSpec((P * E + T, N_GLOBAL), lambda i: (0, 0)),
            pl.BlockSpec((P * E, T), lambda i: (0, 0)),
            pl.BlockSpec((P * T, P * E), lambda i: (0, 0)),
        ],
        out_specs=(
            pl.BlockSpec((T, HD), lambda i: (0, 0)),
            pl.BlockSpec((P * E, HD), lambda i: (0, 0)),
        ),
        scratch_shapes=[
            pltpu.VMEM((HD, HD), jnp.bfloat16),   # m_head
            pltpu.VMEM((HD, HD), jnp.bfloat16),   # m_pos
        ],
        compiler_params=pltpu.CompilerParams(
            dimension_semantics=("arbitrary",),
            vmem_limit_bytes=32 * 1024 * 1024),
    )(features, w_cat, g_blk, gath0, scat_gather, scat_blk)


# ------------------------------- JAX glue (jit) --------------------------------
@jax.jit
def magnn_ctr_forward(features, edge_metapath_indices_list, dst_idx_list,
                      target_idx_list, node_list, w_rnn_list):
    nid = jnp.arange(N_GLOBAL)

    # block-diag mean matrices: row p*E+e holds counts/L of each global node in the
    # length-L metapath instance, so mean_L(edata[p]) == G[p] @ features
    g_blk = jnp.zeros((P * E, P * N_GLOBAL), jnp.float32)
    for p in range(P):
        cnt = (edge_metapath_indices_list[p][:, :, None] == nid[None, None, :]
               ).astype(jnp.float32).sum(axis=1) * (1.0 / L)            # (E, N)
        g_blk = g_blk.at[p * E:(p + 1) * E,
                         p * N_GLOBAL:(p + 1) * N_GLOBAL].set(cnt)

    # one-hot gather rows: P*E rows (it==0 dst-node feats) + T rows (residual base)
    rows = []
    for p in range(P):
        gidx = node_list[p][dst_idx_list[p]]                            # (E,)
        rows.append((gidx[:, None] == nid[None, :]).astype(jnp.float32))
    base_gidx = node_list[0][target_idx_list[0]]                        # (T,)
    rows.append((base_gidx[:, None] == nid[None, :]).astype(jnp.float32))
    gath0 = jnp.concatenate(rows, axis=0)                               # (P*E+T, N)

    # it>0: zeros.at[target].set(u) then gather at dst -> (P*E, T) one-hot (bf16)
    scat_gather = jnp.concatenate(
        [dst_idx_list[p][:, None] == target_idx_list[p][None, :] for p in range(P)],
        axis=0).astype(jnp.bfloat16)
    # scatter-add edges -> target nodes, block-diagonal over metapaths (bf16)
    scat_blk = jnp.zeros((P * T, P * E), jnp.bfloat16)
    for p in range(P):
        blk = (target_idx_list[p][:, None] == dst_idx_list[p][None, :]
               ).astype(jnp.bfloat16)
        scat_blk = scat_blk.at[p * T:(p + 1) * T, p * E:(p + 1) * E].set(blk)

    w_cat = jnp.concatenate(w_rnn_list, axis=1)                         # (HD, P*HD)

    u, abc = _fused_call(features, w_cat, g_blk, gath0, scat_gather, scat_blk)

    # per-head attention values: broadcast buffer -> first lane of each head block
    a = abc.reshape(P, E, H, D)[..., 0]                                  # (P, E, H)
    att_outs = [a[p][:, :, None] for p in range(P)]                      # (E, H, 1) each
    return u.reshape(T, H, D), att_outs


# --------------------------------- main -----------------------------------------
if __name__ == "__main__":
    key = jax.random.PRNGKey(0)
    ks = jax.random.split(key, 12)

    features = jax.random.normal(ks[0], (N_GLOBAL, HD), jnp.float32)

    edge_metapath_indices_list = [
        jax.random.randint(ks[1 + p], (E, L), 0, N_GLOBAL) for p in range(P)
    ]
    node_list = [
        jax.random.randint(ks[3 + p], (NN,), 0, N_GLOBAL) for p in range(P)
    ]
    dst_idx_list = [
        jax.random.randint(ks[5 + p], (E,), 0, NN) for p in range(P)
    ]
    target_idx_list = [
        jax.random.permutation(ks[7 + p], NN)[:T] for p in range(P)
    ]

    # deterministic "xavier-style" parameter init
    def xavier(k, shape, gain=1.414):
        fan_in, fan_out = shape[-1], shape[0]
        bound = gain * (6.0 / (fan_in + fan_out)) ** 0.5
        return jax.random.uniform(k, shape, jnp.float32, -bound, bound)

    w_rnn_list = [xavier(ks[9 + p], (HD, HD), gain=1.0) for p in range(P)]
    # TODO(synk): fc1 / fc2 exist in __init__ but are unused in the reference forward
    # (beta is softmax of zeros == uniform 1/P); created only for parameter parity.
    fc1_w = xavier(ks[11], (D, D))
    fc2_w = xavier(jax.random.fold_in(ks[11], 1), (H, D))

    u, att_outs = magnn_ctr_forward(
        features, edge_metapath_indices_list, dst_idx_list,
        target_idx_list, node_list, w_rnn_list)

    u = jax.block_until_ready(u)
    att_outs = [jax.block_until_ready(a) for a in att_outs]

    assert u.shape == (T, H, D)
    assert all(a.shape == (E, H, 1) for a in att_outs)
    assert bool(jnp.all(jnp.isfinite(u)))
    assert all(bool(jnp.all(jnp.isfinite(a))) for a in att_outs)
    print("KERNEL_OK")
</pallas_src>

<mosaic_0001>
module attributes {stable_mosaic.version = 11 : i64} {
  func.func @_fused_kernel(%arg0: i32, %arg1: memref<24x128xf32, #tpu.memory_space<vmem>>, %arg2: memref<128x256xf32, #tpu.memory_space<vmem>>, %arg3: memref<32x48xf32, #tpu.memory_space<vmem>>, %arg4: memref<40x24xf32, #tpu.memory_space<vmem>>, %arg5: memref<32x8xbf16, #tpu.memory_space<vmem>>, %arg6: memref<16x32xbf16, #tpu.memory_space<vmem>>, %arg7: memref<8x128xf32, #tpu.memory_space<vmem>>, %arg8: memref<32x128xf32, #tpu.memory_space<vmem>>, %arg9: memref<128x128xbf16, #tpu.memory_space<vmem>>, %arg10: memref<128x128xbf16, #tpu.memory_space<vmem>>) attributes {dimension_semantics = [#tpu.dimension_semantics<arbitrary>], iteration_bounds = array<i64: 1>, scalar_prefetch = 0 : i64, scratch_operands = 2 : i64, tpu.core_type = #tpu.core_type<tc>, window_params = [{pipeline_mode = #tpu.pipeline_mode<synchronous>, transform_indices = @transform_0, window_bounds = array<i64: 24, 128>}, {pipeline_mode = #tpu.pipeline_mode<synchronous>, transform_indices = @transform_1, window_bounds = array<i64: 128, 256>}, {pipeline_mode = #tpu.pipeline_mode<synchronous>, transform_indices = @transform_2, window_bounds = array<i64: 32, 48>}, {pipeline_mode = #tpu.pipeline_mode<synchronous>, transform_indices = @transform_3, window_bounds = array<i64: 40, 24>}, {pipeline_mode = #tpu.pipeline_mode<synchronous>, transform_indices = @transform_4, window_bounds = array<i64: 32, 8>}, {pipeline_mode = #tpu.pipeline_mode<synchronous>, transform_indices = @transform_5, window_bounds = array<i64: 16, 32>}, {pipeline_mode = #tpu.pipeline_mode<synchronous>, transform_indices = @transform_6, window_bounds = array<i64: 8, 128>}, {pipeline_mode = #tpu.pipeline_mode<synchronous>, transform_indices = @transform_7, window_bounds = array<i64: 32, 128>}]} {
    %0 = tpu.iota {dimensions = array<i32: 0>} : vector<128x128xi32>
    %1 = arith.sitofp %0 : vector<128x128xi32> to vector<128x128xf32>
    %2 = tpu.iota {dimensions = array<i32: 1>} : vector<128x128xi32>
    %3 = arith.sitofp %2 : vector<128x128xi32> to vector<128x128xf32>
    %cst = arith.constant 3.125000e-02 : f32
    %4 = vector.broadcast %cst : f32 to vector<128x128xf32>
    %5 = arith.mulf %1, %4 : vector<128x128xf32>
    %6 = math.floor %5 : vector<128x128xf32>
    %cst_0 = arith.constant 3.125000e-02 : f32
    %7 = vector.broadcast %cst_0 : f32 to vector<128x128xf32>
    %8 = arith.mulf %3, %7 : vector<128x128xf32>
    %9 = math.floor %8 : vector<128x128xf32>
    %10 = arith.cmpf oeq, %6, %9 : vector<128x128xf32>
    %cst_1 = arith.constant 1.000000e+00 : f32
    %cst_2 = arith.constant 0.000000e+00 : f32
    %11 = vector.broadcast %cst_1 : f32 to vector<128x128xf32>
    %12 = vector.broadcast %cst_2 : f32 to vector<128x128xf32>
    %13 = arith.select %10, %11, %12 : vector<128x128xi1>, vector<128x128xf32>
    %14 = arith.truncf %13 : vector<128x128xf32> to vector<128x128xbf16>
    %c0 = arith.constant 0 : index
    %c0_3 = arith.constant 0 : index
    %15 = vector.load %arg9[%c0, %c0_3] : memref<128x128xbf16, #tpu.memory_space<vmem>>, vector<128x128xbf16>
    tpu.vector_store %arg9[%c0, %c0_3], %14 {strides = array<i32>} : memref<128x128xbf16, #tpu.memory_space<vmem>>, vector<128x128xbf16>,
    %cst_4 = arith.constant 3.200000e+01 : f32
    %16 = vector.broadcast %cst_4 : f32 to vector<128x128xf32>
    %17 = arith.mulf %16, %6 : vector<128x128xf32>
    %18 = arith.subf %1, %17 : vector<128x128xf32>
    %cst_5 = arith.constant 3.200000e+01 : f32
    %19 = vector.broadcast %cst_5 : f32 to vector<128x128xf32>
    %20 = arith.mulf %19, %9 : vector<128x128xf32>
    %21 = arith.subf %3, %20 : vector<128x128xf32>
    %22 = arith.cmpf oeq, %18, %21 : vector<128x128xf32>
    %cst_6 = arith.constant 1.000000e+00 : f32
    %cst_7 = arith.constant 0.000000e+00 : f32
    %23 = vector.broadcast %cst_6 : f32 to vector<128x128xf32>
    %24 = vector.broadcast %cst_7 : f32 to vector<128x128xf32>
    %25 = arith.select %22, %23, %24 : vector<128x128xi1>, vector<128x128xf32>
    %26 = arith.truncf %25 : vector<128x128xf32> to vector<128x128xbf16>
    %c0_8 = arith.constant 0 : index
    %c0_9 = arith.constant 0 : index
    %27 = vector.load %arg10[%c0_8, %c0_9] : memref<128x128xbf16, #tpu.memory_space<vmem>>, vector<128x128xbf16>
    tpu.vector_store %arg10[%c0_8, %c0_9], %26 {strides = array<i32>} : memref<128x128xbf16, #tpu.memory_space<vmem>>, vector<128x128xbf16>,
    %c0_10 = arith.constant 0 : index
    %c0_11 = arith.constant 0 : index
    %28 = vector.load %arg1[%c0_10, %c0_11] : memref<24x128xf32, #tpu.memory_space<vmem>>, vector<24x128xf32>
    %c0_12 = arith.constant 0 : index
    %c0_13 = arith.constant 0 : index
    %29 = vector.load %arg2[%c0_12, %c0_13] : memref<128x256xf32, #tpu.memory_space<vmem>>, vector<128x256xf32>
    %cst_14 = arith.constant dense<0.000000e+00> : vector<24x256xf32>
    %30 = tpu.matmul %28, %29, %cst_14 {dimension_numbers = #tpu.dot_dimension_numbers<[1], [0], [0], [1], [0, 0, 1, 1], [], []>} : vector<24x128xf32>, vector<128x256xf32>, vector<24x256xf32> -> vector<24x256xf32>
    %31 = vector.extract_strided_slice %30 {offsets = [0, 0], sizes = [24, 128], strides = [1, 1]} : vector<24x256xf32> to vector<24x128xf32>
    %32 = vector.extract_strided_slice %30 {offsets = [0, 128], sizes = [24, 128], strides = [1, 1]} : vector<24x256xf32> to vector<24x128xf32>
    %33 = tpu.concatenate %31, %32 in 0 : vector<24x128xf32>, vector<24x128xf32> -> vector<48x128xf32>
    %c0_15 = arith.constant 0 : index
    %c0_16 = arith.constant 0 : index
    %34 = vector.load %arg3[%c0_15, %c0_16] : memref<32x48xf32, #tpu.memory_space<vmem>>, vector<32x48xf32>
    %cst_17 = arith.constant dense<0.000000e+00> : vector<32x128xf32>
    %35 = tpu.matmul %34, %33, %cst_17 {dimension_numbers = #tpu.dot_dimension_numbers<[1], [0], [0], [1], [0, 0, 1, 1], [], []>} : vector<32x48xf32>, vector<48x128xf32>, vector<32x128xf32> -> vector<32x128xf32>
    %36 = arith.mulf %35, %35 : vector<32x128xf32>
    %37 = arith.truncf %36 : vector<32x128xf32> to vector<32x128xbf16>
    %c0_18 = arith.constant 0 : index
    %c0_19 = arith.constant 0 : index
    %38 = vector.load %arg10[%c0_18, %c0_19] : memref<128x128xbf16, #tpu.memory_space<vmem>>, vector<128x128xbf16>
    %cst_20 = arith.constant dense<0.000000e+00> : vector<32x128xf32>
    %39 = tpu.matmul %37, %38, %cst_20 {dimension_numbers = #tpu.dot_dimension_numbers<[1], [0], [0], [1], [0, 0, 1, 1], [], []>} : vector<32x128xbf16>, vector<128x128xbf16>, vector<32x128xf32> -> vector<32x128xf32>
    %cst_21 = arith.constant 1.000000e-24 : f32
    %40 = vector.broadcast %cst_21 : f32 to vector<32x128xf32>
    %41 = arith.maximumf %39, %40 : vector<32x128xf32>
    %42 = math.rsqrt %41 : vector<32x128xf32>
    %43 = arith.mulf %35, %42 : vector<32x128xf32>
    %c0_22 = arith.constant 0 : index
    %c0_23 = arith.constant 0 : index
    %44 = vector.load %arg4[%c0_22, %c0_23] : memref<40x24xf32, #tpu.memory_space<vmem>>, vector<40x24xf32>
    %cst_24 = arith.constant dense<0.000000e+00> : vector<40x128xf32>
    %45 = tpu.matmul %44, %28, %cst_24 {dimension_numbers = #tpu.dot_dimension_numbers<[1], [0], [0], [1], [0, 0, 1, 1], [], []>} : vector<40x24xf32>, vector<24x128xf32>, vector<40x128xf32> -> vector<40x128xf32>
    %46 = arith.mulf %45, %45 : vector<40x128xf32>
    %47 = arith.truncf %46 : vector<40x128xf32> to vector<40x128xbf16>
    %c0_25 = arith.constant 0 : index
    %c0_26 = arith.constant 0 : index
    %48 = vector.load %arg10[%c0_25, %c0_26] : memref<128x128xbf16, #tpu.memory_space<vmem>>, vector<128x128xbf16>
    %cst_27 = arith.constant dense<0.000000e+00> : vector<40x128xf32>
    %49 = tpu.matmul %47, %48, %cst_27 {dimension_numbers = #tpu.dot_dimension_numbers<[1], [0], [0], [1], [0, 0, 1, 1], [], []>} : vector<40x128xbf16>, vector<128x128xbf16>, vector<40x128xf32> -> vector<40x128xf32>
    %cst_28 = arith.constant 1.000000e-24 : f32
    %50 = vector.broadcast %cst_28 : f32 to vector<40x128xf32>
    %51 = arith.maximumf %49, %50 : vector<40x128xf32>
    %52 = math.rsqrt %51 : vector<40x128xf32>
    %53 = arith.mulf %45, %52 : vector<40x128xf32>
    %54 = vector.extract_strided_slice %53 {offsets = [0, 0], sizes = [32, 128], strides = [1, 1]} : vector<40x128xf32> to vector<32x128xf32>
    %55 = vector.extract_strided_slice %53 {offsets = [32, 0], sizes = [8, 128], strides = [1, 1]} : vector<40x128xf32> to vector<8x128xf32>
    %56 = arith.mulf %43, %54 : vector<32x128xf32>
    %57 = arith.truncf %56 : vector<32x128xf32> to vector<32x128xbf16>
    %c0_29 = arith.constant 0 : index
    %c0_30 = arith.constant 0 : index
    %58 = vector.load %arg9[%c0_29, %c0_30] : memref<128x128xbf16, #tpu.memory_space<vmem>>, vector<128x128xbf16>
    %cst_31 = arith.constant dense<0.000000e+00> : vector<32x128xf32>
    %59 = tpu.matmul %57, %58, %cst_31 {dimension_numbers = #tpu.dot_dimension_numbers<[1], [0], [0], [1], [0, 0, 1, 1], [], []>} : vector<32x128xbf16>, vector<128x128xbf16>, vector<32x128xf32> -> vector<32x128xf32>
    %cst_32 = arith.constant dense<0xFF800000> : vector<32xf32>
    %60 = vector.multi_reduction <maximumf>, %59, %cst_32 [1] : vector<32x128xf32> to vector<32xf32>
    %61 = vector.shape_cast %60 : vector<32xf32> to vector<32x1xf32>
    %62 = vector.broadcast %61 : vector<32x1xf32> to vector<32x128xf32>
    %63 = arith.subf %59, %62 : vector<32x128xf32>
    %64 = math.exp %63 : vector<32x128xf32>
    %cst_33 = arith.constant dense<0.000000e+00> : vector<32xf32>
    %65 = vector.multi_reduction <add>, %64, %cst_33 [1] : vector<32x128xf32> to vector<32xf32>
    %66 = vector.shape_cast %65 : vector<32xf32> to vector<32x1xf32>
    %cst_34 = arith.constant 3.125000e-02 : f32
    %67 = vector.broadcast %cst_34 : f32 to vector<32x1xf32>
    %68 = arith.mulf %66, %67 : vector<32x1xf32>
    %69 = vector.broadcast %68 : vector<32x1xf32> to vector<32x128xf32>
    %70 = arith.divf %64, %69 : vector<32x128xf32>
    %71 = arith.mulf %43, %70 : vector<32x128xf32>
    %c0_35 = arith.constant 0 : index
    %c0_36 = arith.constant 0 : index
    %72 = vector.load %arg6[%c0_35, %c0_36] : memref<16x32xbf16, #tpu.memory_space<vmem>>, vector<16x32xbf16>
    %73 = arith.truncf %71 : vector<32x128xf32> to vector<32x128xbf16>
    %cst_37 = arith.constant dense<0.000000e+00> : vector<16x128xf32>
    %74 = tpu.matmul %72, %73, %cst_37 {dimension_numbers = #tpu.dot_dimension_numbers<[1], [0], [0], [1], [0, 0, 1, 1], [], []>} : vector<16x32xbf16>, vector<32x128xbf16>, vector<16x128xf32> -> vector<16x128xf32>
    %cst_38 = arith.constant 1.000000e-15 : f32
    %75 = vector.broadcast %cst_38 : f32 to vector<16x128xf32>
    %76 = arith.addf %74, %75 : vector<16x128xf32>
    %77 = arith.mulf %76, %76 : vector<16x128xf32>
    %78 = arith.truncf %77 : vector<16x128xf32> to vector<16x128xbf16>
    %c0_39 = arith.constant 0 : index
    %c0_40 = arith.constant 0 : index
    %79 = vector.load %arg10[%c0_39, %c0_40] : memref<128x128xbf16, #tpu.memory_space<vmem>>, vector<128x128xbf16>
    %cst_41 = arith.constant dense<0.000000e+00> : vector<16x128xf32>
    %80 = tpu.matmul %78, %79, %cst_41 {dimension_numbers = #tpu.dot_dimension_numbers<[1], [0], [0], [1], [0, 0, 1, 1], [], []>} : vector<16x128xbf16>, vector<128x128xbf16>, vector<16x128xf32> -> vector<16x128xf32>
    %cst_42 = arith.constant 1.000000e-24 : f32
    %81 = vector.broadcast %cst_42 : f32 to vector<16x128xf32>
    %82 = arith.maximumf %80, %81 : vector<16x128xf32>
    %83 = math.rsqrt %82 : vector<16x128xf32>
    %84 = arith.mulf %76, %83 : vector<16x128xf32>
    %85 = vector.extract_strided_slice %84 {offsets = [0, 0], sizes = [8, 128], strides = [1, 1]} : vector<16x128xf32> to vector<8x128xf32>
    %86 = vector.extract_strided_slice %84 {offsets = [8, 0], sizes = [8, 128], strides = [1, 1]} : vector<16x128xf32> to vector<8x128xf32>
    %87 = arith.addf %85, %86 : vector<8x128xf32>
    %cst_43 = arith.constant 5.000000e-01 : f32
    %88 = vector.broadcast %cst_43 : f32 to vector<8x128xf32>
    %89 = arith.mulf %87, %88 : vector<8x128xf32>
    %90 = arith.addf %55, %89 : vector<8x128xf32>
    %91 = arith.mulf %90, %90 : vector<8x128xf32>
    %92 = arith.truncf %91 : vector<8x128xf32> to vector<8x128xbf16>
    %c0_44 = arith.constant 0 : index
    %c0_45 = arith.constant 0 : index
    %93 = vector.load %arg10[%c0_44, %c0_45] : memref<128x128xbf16, #tpu.memory_space<vmem>>, vector<128x128xbf16>
    %cst_46 = arith.constant dense<0.000000e+00> : vector<8x128xf32>
    %94 = tpu.matmul %92, %93, %cst_46 {dimension_numbers = #tpu.dot_dimension_numbers<[1], [0], [0], [1], [0, 0, 1, 1], [], []>} : vector<8x128xbf16>, vector<128x128xbf16>, vector<8x128xf32> -> vector<8x128xf32>
    %cst_47 = arith.constant 1.000000e-24 : f32
    %95 = vector.broadcast %cst_47 : f32 to vector<8x128xf32>
    %96 = arith.maximumf %94, %95 : vector<8x128xf32>
    %97 = math.rsqrt %96 : vector<8x128xf32>
    %98 = arith.mulf %90, %97 : vector<8x128xf32>
    %c0_48 = arith.constant 0 : index
    %c0_49 = arith.constant 0 : index
    %99 = vector.load %arg5[%c0_48, %c0_49] : memref<32x8xbf16, #tpu.memory_space<vmem>>, vector<32x8xbf16>
    %100 = arith.truncf %98 : vector<8x128xf32> to vector<8x128xbf16>
    %cst_50 = arith.constant dense<0.000000e+00> : vector<32x128xf32>
    %101 = tpu.matmul %99, %100, %cst_50 {dimension_numbers = #tpu.dot_dimension_numbers<[1], [0], [0], [1], [0, 0, 1, 1], [], []>} : vector<32x8xbf16>, vector<8x128xbf16>, vector<32x128xf32> -> vector<32x128xf32>
    %102 = arith.mulf %43, %101 : vector<32x128xf32>
    %103 = arith.truncf %102 : vector<32x128xf32> to vector<32x128xbf16>
    %c0_51 = arith.constant 0 : index
    %c0_52 = arith.constant 0 : index
    %104 = vector.load %arg9[%c0_51, %c0_52] : memref<128x128xbf16, #tpu.memory_space<vmem>>, vector<128x128xbf16>
    %cst_53 = arith.constant dense<0.000000e+00> : vector<32x128xf32>
    %105 = tpu.matmul %103, %104, %cst_53 {dimension_numbers = #tpu.dot_dimension_numbers<[1], [0], [0], [1], [0, 0, 1, 1], [], []>} : vector<32x128xbf16>, vector<128x128xbf16>, vector<32x128xf32> -> vector<32x128xf32>
    %cst_54 = arith.constant dense<0xFF800000> : vector<32xf32>
    %106 = vector.multi_reduction <maximumf>, %105, %cst_54 [1] : vector<32x128xf32> to vector<32xf32>
    %107 = vector.shape_cast %106 : vector<32xf32> to vector<32x1xf32>
    %108 = vector.broadcast %107 : vector<32x1xf32> to vector<32x128xf32>
    %109 = arith.subf %105, %108 : vector<32x128xf32>
    %110 = math.exp %109 : vector<32x128xf32>
    %cst_55 = arith.constant dense<0.000000e+00> : vector<32xf32>
    %111 = vector.multi_reduction <add>, %110, %cst_55 [1] : vector<32x128xf32> to vector<32xf32>
    %112 = vector.shape_cast %111 : vector<32xf32> to vector<32x1xf32>
    %cst_56 = arith.constant 3.125000e-02 : f32
    %113 = vector.broadcast %cst_56 : f32 to vector<32x1xf32>
    %114 = arith.mulf %112, %113 : vector<32x1xf32>
    %115 = vector.broadcast %114 : vector<32x1xf32> to vector<32x128xf32>
    %116 = arith.divf %110, %115 : vector<32x128xf32>
    %117 = arith.mulf %43, %116 : vector<32x128xf32>
    %c0_57 = arith.constant 0 : index
    %c0_58 = arith.constant 0 : index
    %118 = vector.load %arg6[%c0_57, %c0_58] : memref<16x32xbf16, #tpu.memory_space<vmem>>, vector<16x32xbf16>
    %119 = arith.truncf %117 : vector<32x128xf32> to vector<32x128xbf16>
    %cst_59 = arith.constant dense<0.000000e+00> : vector<16x128xf32>
    %120 = tpu.matmul %118, %119, %cst_59 {dimension_numbers = #tpu.dot_dimension_numbers<[1], [0], [0], [1], [0, 0, 1, 1], [], []>} : vector<16x32xbf16>, vector<32x128xbf16>, vector<16x128xf32> -> vector<16x128xf32>
    %cst_60 = arith.constant 1.000000e-15 : f32
    %121 = vector.broadcast %cst_60 : f32 to vector<16x128xf32>
    %122 = arith.addf %120, %121 : vector<16x128xf32>
    %123 = arith.mulf %122, %122 : vector<16x128xf32>
    %124 = arith.truncf %123 : vector<16x128xf32> to vector<16x128xbf16>
    %c0_61 = arith.constant 0 : index
    %c0_62 = arith.constant 0 : index
    %125 = vector.load %arg10[%c0_61, %c0_62] : memref<128x128xbf16, #tpu.memory_space<vmem>>, vector<128x128xbf16>
    %cst_63 = arith.constant dense<0.000000e+00> : vector<16x128xf32>
    %126 = tpu.matmul %124, %125, %cst_63 {dimension_numbers = #tpu.dot_dimension_numbers<[1], [0], [0], [1], [0, 0, 1, 1], [], []>} : vector<16x128xbf16>, vector<128x128xbf16>, vector<16x128xf32> -> vector<16x128xf32>
    %cst_64 = arith.constant 1.000000e-24 : f32
    %127 = vector.broadcast %cst_64 : f32 to vector<16x128xf32>
    %128 = arith.maximumf %126, %127 : vector<16x128xf32>
    %129 = math.rsqrt %128 : vector<16x128xf32>
    %130 = arith.mulf %122, %129 : vector<16x128xf32>
    %131 = vector.extract_strided_slice %130 {offsets = [0, 0], sizes = [8, 128], strides = [1, 1]} : vector<16x128xf32> to vector<8x128xf32>
    %132 = vector.extract_strided_slice %130 {offsets = [8, 0], sizes = [8, 128], strides = [1, 1]} : vector<16x128xf32> to vector<8x128xf32>
    %133 = arith.addf %131, %132 : vector<8x128xf32>
    %cst_65 = arith.constant 5.000000e-01 : f32
    %134 = vector.broadcast %cst_65 : f32 to vector<8x128xf32>
    %135 = arith.mulf %133, %134 : vector<8x128xf32>
    %136 = arith.addf %98, %135 : vector<8x128xf32>
    %137 = arith.mulf %136, %136 : vector<8x128xf32>
    %138 = arith.truncf %137 : vector<8x128xf32> to vector<8x128xbf16>
    %c0_66 = arith.constant 0 : index
    %c0_67 = arith.constant 0 : index
    %139 = vector.load %arg10[%c0_66, %c0_67] : memref<128x128xbf16, #tpu.memory_space<vmem>>, vector<128x128xbf16>
    %cst_68 = arith.constant dense<0.000000e+00> : vector<8x128xf32>
    %140 = tpu.matmul %138, %139, %cst_68 {dimension_numbers = #tpu.dot_dimension_numbers<[1], [0], [0], [1], [0, 0, 1, 1], [], []>} : vector<8x128xbf16>, vector<128x128xbf16>, vector<8x128xf32> -> vector<8x128xf32>
    %cst_69 = arith.constant 1.000000e-24 : f32
    %141 = vector.broadcast %cst_69 : f32 to vector<8x128xf32>
    %142 = arith.maximumf %140, %141 : vector<8x128xf32>
    %143 = math.rsqrt %142 : vector<8x128xf32>
    %144 = arith.mulf %136, %143 : vector<8x128xf32>
    %c0_70 = arith.constant 0 : index
    %c0_71 = arith.constant 0 : index
    %145 = vector.load %arg5[%c0_70, %c0_71] : memref<32x8xbf16, #tpu.memory_space<vmem>>, vector<32x8xbf16>
    %146 = arith.truncf %144 : vector<8x128xf32> to vector<8x128xbf16>
    %cst_72 = arith.constant dense<0.000000e+00> : vector<32x128xf32>
    %147 = tpu.matmul %145, %146, %cst_72 {dimension_numbers = #tpu.dot_dimension_numbers<[1], [0], [0], [1], [0, 0, 1, 1], [], []>} : vector<32x8xbf16>, vector<8x128xbf16>, vector<32x128xf32> -> vector<32x128xf32>
    %148 = arith.mulf %43, %147 : vector<32x128xf32>
    %149 = arith.truncf %148 : vector<32x128xf32> to vector<32x128xbf16>
    %c0_73 = arith.constant 0 : index
    %c0_74 = arith.constant 0 : index
    %150 = vector.load %arg9[%c0_73, %c0_74] : memref<128x128xbf16, #tpu.memory_space<vmem>>, vector<128x128xbf16>
    %cst_75 = arith.constant dense<0.000000e+00> : vector<32x128xf32>
    %151 = tpu.matmul %149, %150, %cst_75 {dimension_numbers = #tpu.dot_dimension_numbers<[1], [0], [0], [1], [0, 0, 1, 1], [], []>} : vector<32x128xbf16>, vector<128x128xbf16>, vector<32x128xf32> -> vector<32x128xf32>
    %cst_76 = arith.constant dense<0xFF800000> : vector<32xf32>
    %152 = vector.multi_reduction <maximumf>, %151, %cst_76 [1] : vector<32x128xf32> to vector<32xf32>
    %153 = vector.shape_cast %152 : vector<32xf32> to vector<32x1xf32>
    %154 = vector.broadcast %153 : vector<32x1xf32> to vector<32x128xf32>
    %155 = arith.subf %151, %154 : vector<32x128xf32>
    %156 = math.exp %155 : vector<32x128xf32>
    %cst_77 = arith.constant dense<0.000000e+00> : vector<32xf32>
    %157 = vector.multi_reduction <add>, %156, %cst_77 [1] : vector<32x128xf32> to vector<32xf32>
    %158 = vector.shape_cast %157 : vector<32xf32> to vector<32x1xf32>
    %cst_78 = arith.constant 3.125000e-02 : f32
    %159 = vector.broadcast %cst_78 : f32 to vector<32x1xf32>
    %160 = arith.mulf %158, %159 : vector<32x1xf32>
    %161 = vector.broadcast %160 : vector<32x1xf32> to vector<32x128xf32>
    %162 = arith.divf %156, %161 : vector<32x128xf32>
    %c0_79 = arith.constant 0 : index
    %c0_80 = arith.constant 0 : index
    %163 = vector.load %arg8[%c0_79, %c0_80] : memref<32x128xf32, #tpu.memory_space<vmem>>, vector<32x128xf32>
    tpu.vector_store %arg8[%c0_79, %c0_80], %162 {strides = array<i32>} : memref<32x128xf32, #tpu.memory_space<vmem>>, vector<32x128xf32>,
    %164 = arith.mulf %43, %162 : vector<32x128xf32>
    %c0_81 = arith.constant 0 : index
    %c0_82 = arith.constant 0 : index
    %165 = vector.load %arg6[%c0_81, %c0_82] : memref<16x32xbf16, #tpu.memory_space<vmem>>, vector<16x32xbf16>
    %166 = arith.truncf %164 : vector<32x128xf32> to vector<32x128xbf16>
    %cst_83 = arith.constant dense<0.000000e+00> : vector<16x128xf32>
    %167 = tpu.matmul %165, %166, %cst_83 {dimension_numbers = #tpu.dot_dimension_numbers<[1], [0], [0], [1], [0, 0, 1, 1], [], []>} : vector<16x32xbf16>, vector<32x128xbf16>, vector<16x128xf32> -> vector<16x128xf32>
    %cst_84 = arith.constant 1.000000e-15 : f32
    %168 = vector.broadcast %cst_84 : f32 to vector<16x128xf32>
    %169 = arith.addf %167, %168 : vector<16x128xf32>
    %170 = arith.mulf %169, %169 : vector<16x128xf32>
    %171 = arith.truncf %170 : vector<16x128xf32> to vector<16x128xbf16>
    %c0_85 = arith.constant 0 : index
    %c0_86 = arith.constant 0 : index
    %172 = vector.load %arg10[%c0_85, %c0_86] : memref<128x128xbf16, #tpu.memory_space<vmem>>, vector<128x128xbf16>
    %cst_87 = arith.constant dense<0.000000e+00> : vector<16x128xf32>
    %173 = tpu.matmul %171, %172, %cst_87 {dimension_numbers = #tpu.dot_dimension_numbers<[1], [0], [0], [1], [0, 0, 1, 1], [], []>} : vector<16x128xbf16>, vector<128x128xbf16>, vector<16x128xf32> -> vector<16x128xf32>
    %cst_88 = arith.constant 1.000000e-24 : f32
    %174 = vector.broadcast %cst_88 : f32 to vector<16x128xf32>
    %175 = arith.maximumf %173, %174 : vector<16x128xf32>
    %176 = math.rsqrt %175 : vector<16x128xf32>
    %177 = arith.mulf %169, %176 : vector<16x128xf32>
    %178 = vector.extract_strided_slice %177 {offsets = [0, 0], sizes = [8, 128], strides = [1, 1]} : vector<16x128xf32> to vector<8x128xf32>
    %179 = vector.extract_strided_slice %177 {offsets = [8, 0], sizes = [8, 128], strides = [1, 1]} : vector<16x128xf32> to vector<8x128xf32>
    %180 = arith.addf %178, %179 : vector<8x128xf32>
    %cst_89 = arith.constant 5.000000e-01 : f32
    %181 = vector.broadcast %cst_89 : f32 to vector<8x128xf32>
    %182 = arith.mulf %180, %181 : vector<8x128xf32>
    %183 = arith.addf %144, %182 : vector<8x128xf32>
    %184 = arith.mulf %183, %183 : vector<8x128xf32>
    %185 = arith.truncf %184 : vector<8x128xf32> to vector<8x128xbf16>
    %c0_90 = arith.constant 0 : index
    %c0_91 = arith.constant 0 : index
    %186 = vector.load %arg10[%c0_90, %c0_91] : memref<128x128xbf16, #tpu.memory_space<vmem>>, vector<128x128xbf16>
    %cst_92 = arith.constant dense<0.000000e+00> : vector<8x128xf32>
    %187 = tpu.matmul %185, %186, %cst_92 {dimension_numbers = #tpu.dot_dimension_numbers<[1], [0], [0], [1], [0, 0, 1, 1], [], []>} : vector<8x128xbf16>, vector<128x128xbf16>, vector<8x128xf32> -> vector<8x128xf32>
    %cst_93 = arith.constant 1.000000e-24 : f32
    %188 = vector.broadcast %cst_93 : f32 to vector<8x128xf32>
    %189 = arith.maximumf %187, %188 : vector<8x128xf32>
    %190 = math.rsqrt %189 : vector<8x128xf32>
    %191 = arith.mulf %183, %190 : vector<8x128xf32>
    %c0_94 = arith.constant 0 : index
    %c0_95 = arith.constant 0 : index
    %192 = vector.load %arg7[%c0_94, %c0_95] : memref<8x128xf32, #tpu.memory_space<vmem>>, vector<8x128xf32>
    tpu.vector_store %arg7[%c0_94, %c0_95], %191 {strides = array<i32>} : memref<8x128xf32, #tpu.memory_space<vmem>>, vector<8x128xf32>,
    return
  }
  func.func @transform_0(%arg0: i32) -> (i32, i32) {
    %c0_i32 = arith.constant 0 : i32
    %c0_i32_0 = arith.constant 0 : i32
    %c0_i32_1 = arith.constant 0 : i32
    return %c0_i32, %c0_i32_0 : i32, i32
  }
  func.func @transform_1(%arg0: i32) -> (i32, i32) {
    %c0_i32 = arith.constant 0 : i32
    %c0_i32_0 = arith.constant 0 : i32
    %c0_i32_1 = arith.constant 0 : i32
    return %c0_i32, %c0_i32_0 : i32, i32
  }
  func.func @transform_2(%arg0: i32) -> (i32, i32) {
    %c0_i32 = arith.constant 0 : i32
    %c0_i32_0 = arith.constant 0 : i32
    %c0_i32_1 = arith.constant 0 : i32
    return %c0_i32, %c0_i32_0 : i32, i32
  }
  func.func @transform_3(%arg0: i32) -> (i32, i32) {
    %c0_i32 = arith.constant 0 : i32
    %c0_i32_0 = arith.constant 0 : i32
    %c0_i32_1 = arith.constant 0 : i32
    return %c0_i32, %c0_i32_0 : i32, i32
  }
  func.func @transform_4(%arg0: i32) -> (i32, i32) {
    %c0_i32 = arith.constant 0 : i32
    %c0_i32_0 = arith.constant 0 : i32
    %c0_i32_1 = arith.constant 0 : i32
    return %c0_i32, %c0_i32_0 : i32, i32
  }
  func.func @transform_5(%arg0: i32) -> (i32, i32) {
    %c0_i32 = arith.constant 0 : i32
    %c0_i32_0 = arith.constant 0 : i32
    %c0_i32_1 = arith.constant 0 : i32
    return %c0_i32, %c0_i32_0 : i32, i32
  }
  func.func @transform_6(%arg0: i32) -> (i32, i32) {
    %c0_i32 = arith.constant 0 : i32
    %c0_i32_0 = arith.constant 0 : i32
    %c0_i32_1 = arith.constant 0 : i32
    return %c0_i32, %c0_i32_0 : i32, i32
  }
  func.func @transform_7(%arg0: i32) -> (i32, i32) {
    %c0_i32 = arith.constant 0 : i32
    %c0_i32_0 = arith.constant 0 : i32
    %c0_i32_1 = arith.constant 0 : i32
    return %c0_i32, %c0_i32_0 : i32, i32
  }
}

</mosaic_0001>

<llo_original>
// kernel: magnn_ctr_forward.1
$region0: #{magnn_ctr_forward.1}
  #allocation0 [shape = 'u32[]', space=smem, size = 0x4, offset = 0x4, fixed_abs, tag = 'smem constant byte address 0x4 - core index']
  #allocation1 [shape = 'u32[144,128]{1,0:T(1,128)}', space=vmem, size = 0x12000, scoped, tag = 'internal scratch']
  #allocation2 [shape = 'bf16[128,128]{1,0:T(16,128)(2,1)}', space=vmem, size = 0x8000, scoped, tag = 'scratch operand']
  #allocation3 [shape = 'bf16[128,128]{1,0:T(16,128)(2,1)}', space=vmem, size = 0x8000, scoped, tag = 'scratch operand']
  %s0 = inlined_call_operand.vmem [shape: f32[24,128], index: 0, kind: input, shape index: {}]
  %s1 = inlined_call_operand.vmem [shape: f32[128,256], index: 1, kind: input, shape index: {}]
  %s2 = inlined_call_operand.vmem [shape: f32[32,48], index: 2, kind: input, shape index: {}]
  %s3 = inlined_call_operand.vmem [shape: f32[40,24], index: 3, kind: input, shape index: {}]
  %s4 = inlined_call_operand.vmem [shape: bf16[32,8], index: 4, kind: input, shape index: {}]
  %s5 = inlined_call_operand.vmem [shape: bf16[16,32], index: 5, kind: input, shape index: {}]
  %s6 = inlined_call_operand.vmem [shape: f32[8,128], index: 6, kind: output, shape index: {0}]
  %s7 = inlined_call_operand.vmem [shape: f32[32,128], index: 7, kind: output, shape index: {1}]
  %8 = xla_tuple %s6, %s7
  %s9 = sld [smem:[#allocation0]]
  $region42: #{magnn_ctr_forward.1} parent=0
    _
  %s11 = ssub.s32 1, %s9
  %s12 = scalar_select 0, %s11, %s9
  // Predicated region
  $region2: #{magnn_ctr_forward.1} parent=0 // pred_check
    _
  $region3: #{magnn_ctr_forward.1} parent=0 // pred_check_branch
    %14 = sbr.rel (0) target = $region5
  $region4: #{magnn_ctr_forward.1} parent=0 // pred_region
    _
  $region5: #{magnn_ctr_forward.1} parent=0 // pred_fallthru
    _
  // Predicated region
  $region6: #{magnn_ctr_forward.1} parent=0 // pred_check
    _
  $region7: #{magnn_ctr_forward.1} parent=0 // pred_check_branch
    %16 = sbr.rel (0) target = $region9
  $region8: #{magnn_ctr_forward.1} parent=0 // pred_region
    _
  $region9: #{magnn_ctr_forward.1} parent=0 // pred_fallthru
    _
  // Predicated region
  $region10: #{magnn_ctr_forward.1} parent=0 // pred_check
    _
  $region11: #{magnn_ctr_forward.1} parent=0 // pred_check_branch
    %18 = sbr.rel (0) target = $region13
  $region12: #{magnn_ctr_forward.1} parent=0 // pred_region
    _
  $region13: #{magnn_ctr_forward.1} parent=0 // pred_fallthru
    _
  // Predicated region
  $region14: #{magnn_ctr_forward.1} parent=0 // pred_check
    _
  $region15: #{magnn_ctr_forward.1} parent=0 // pred_check_branch
    %20 = sbr.rel (0) target = $region17
  $region16: #{magnn_ctr_forward.1} parent=0 // pred_region
    _
  $region17: #{magnn_ctr_forward.1} parent=0 // pred_fallthru
    _
  // Predicated region
  $region18: #{magnn_ctr_forward.1} parent=0 // pred_check
    _
  $region19: #{magnn_ctr_forward.1} parent=0 // pred_check_branch
    %22 = sbr.rel (0) target = $region21
  $region20: #{magnn_ctr_forward.1} parent=0 // pred_region
    _
  $region21: #{magnn_ctr_forward.1} parent=0 // pred_fallthru
    _
  // Predicated region
  $region22: #{magnn_ctr_forward.1} parent=0 // pred_check
    _
  $region23: #{magnn_ctr_forward.1} parent=0 // pred_check_branch
    %24 = sbr.rel (0) target = $region25
  $region24: #{magnn_ctr_forward.1} parent=0 // pred_region
    _
  $region25: #{magnn_ctr_forward.1} parent=0 // pred_fallthru
    _
  %v26 = vlaneseq
  %v27 = vshrl.u32 %v26, 7
  %v28 = vadd.s32 %v27, 8
  %v29 = vadd.s32 %v27, 16
  %v30 = vadd.s32 %v27, 24
  %v31 = vadd.s32 %v27, 32
  %v32 = vadd.s32 %v27, 40
  %v33 = vadd.s32 %v27, 48
  %v34 = vadd.s32 %v27, 56
  %v35 = vadd.s32 %v27, 64
  %v36 = vadd.s32 %v27, 72
  %v37 = vadd.s32 %v27, 80
  %v38 = vadd.s32 %v27, 88
  %v39 = vadd.s32 %v27, 96
  %v40 = vadd.s32 %v27, 104
  %v41 = vadd.s32 %v27, 112
  %v42 = vadd.s32 %v27, 120
  %v43 = vcvt.s32.f32 %v27
  %v44 = vcvt.s32.f32 %v28
  %v45 = vcvt.s32.f32 %v29
  %v46 = vcvt.s32.f32 %v30
  %v47 = vcvt.s32.f32 %v31
  %v48 = vcvt.s32.f32 %v32
  %v49 = vcvt.s32.f32 %v33
  %v50 = vcvt.s32.f32 %v34
  %v51 = vcvt.s32.f32 %v35
  %v52 = vcvt.s32.f32 %v36
  %v53 = vcvt.s32.f32 %v37
  %v54 = vcvt.s32.f32 %v38
  %v55 = vcvt.s32.f32 %v39
  %v56 = vcvt.s32.f32 %v40
  %v57 = vcvt.s32.f32 %v41
  %v58 = vcvt.s32.f32 %v42
  %v59 = vlaneseq
  %v60 = vand.u32 %v59, 127
  %v61 = vcvt.s32.f32 %v60
  %v62 = vmul.f32 %v43, 0.03125
  %v63 = vmul.f32 %v44, 0.03125
  %v64 = vmul.f32 %v45, 0.03125
  %v65 = vmul.f32 %v46, 0.03125
  %v66 = vmul.f32 %v47, 0.03125
  %v67 = vmul.f32 %v48, 0.03125
  %v68 = vmul.f32 %v49, 0.03125
  %v69 = vmul.f32 %v50, 0.03125
  %v70 = vmul.f32 %v51, 0.03125
  %v71 = vmul.f32 %v52, 0.03125
  %v72 = vmul.f32 %v53, 0.03125
  %v73 = vmul.f32 %v54, 0.03125
  %v74 = vmul.f32 %v55, 0.03125
  %v75 = vmul.f32 %v56, 0.03125
  %v76 = vmul.f32 %v57, 0.03125
  %v77 = vmul.f32 %v58, 0.03125
  %v78 = vfloor.f32 %v62
  %v79 = vfloor.f32 %v63
  %v80 = vfloor.f32 %v64
  %v81 = vfloor.f32 %v65
  %v82 = vfloor.f32 %v66
  %v83 = vfloor.f32 %v67
  %v84 = vfloor.f32 %v68
  %v85 = vfloor.f32 %v69
  %v86 = vfloor.f32 %v70
  %v87 = vfloor.f32 %v71
  %v88 = vfloor.f32 %v72
  %v89 = vfloor.f32 %v73
  %v90 = vfloor.f32 %v74
  %v91 = vfloor.f32 %v75
  %v92 = vfloor.f32 %v76
  %v93 = vfloor.f32 %v77
  %v94 = vmul.f32 %v61, 0.03125
  %v95 = vfloor.f32 %v94
  %vm96 = vcmp.eq.f32.partialorder %v78, %v95
  %vm97 = vcmp.eq.f32.partialorder %v79, %v95
  %vm98 = vcmp.eq.f32.partialorder %v80, %v95
  %vm99 = vcmp.eq.f32.partialorder %v81, %v95
  %vm100 = vcmp.eq.f32.partialorder %v82, %v95
  %vm101 = vcmp.eq.f32.partialorder %v83, %v95
  %vm102 = vcmp.eq.f32.partialorder %v84, %v95
  %vm103 = vcmp.eq.f32.partialorder %v85, %v95
  %vm104 = vcmp.eq.f32.partialorder %v86, %v95
  %vm105 = vcmp.eq.f32.partialorder %v87, %v95
  %vm106 = vcmp.eq.f32.partialorder %v88, %v95
  %vm107 = vcmp.eq.f32.partialorder %v89, %v95
  %vm108 = vcmp.eq.f32.partialorder %v90, %v95
  %vm109 = vcmp.eq.f32.partialorder %v91, %v95
  %vm110 = vcmp.eq.f32.partialorder %v92, %v95
  %vm111 = vcmp.eq.f32.partialorder %v93, %v95
  %v112 = vsel %vm96, 1.0, 0.0
  %v113 = vsel %vm97, 1.0, 0.0
  %v114 = vsel %vm98, 1.0, 0.0
  %v115 = vsel %vm99, 1.0, 0.0
  %v116 = vsel %vm100, 1.0, 0.0
  %v117 = vsel %vm101, 1.0, 0.0
  %v118 = vsel %vm102, 1.0, 0.0
  %v119 = vsel %vm103, 1.0, 0.0
  %v120 = vsel %vm104, 1.0, 0.0
  %v121 = vsel %vm105, 1.0, 0.0
  %v122 = vsel %vm106, 1.0, 0.0
  %v123 = vsel %vm107, 1.0, 0.0
  %v124 = vsel %vm108, 1.0, 0.0
  %v125 = vsel %vm109, 1.0, 0.0
  %v126 = vsel %vm110, 1.0, 0.0
  %v127 = vsel %vm111, 1.0, 0.0
  %v128 = vpack.c.bf16 %v113, %v112
  %v129 = vpack.c.bf16 %v115, %v114
  %v130 = vpack.c.bf16 %v117, %v116
  %v131 = vpack.c.bf16 %v119, %v118
  %v132 = vpack.c.bf16 %v121, %v120
  %v133 = vpack.c.bf16 %v123, %v122
  %v134 = vpack.c.bf16 %v125, %v124
  %v135 = vpack.c.bf16 %v127, %v126
  %136 = vst [vmem:[#allocation2] sm:$0xff] %v128
  %137 = vst [vmem:[#allocation2 + $0x8] sm:$0xff] %v129
  %138 = vst [vmem:[#allocation2 + $0x10] sm:$0xff] %v130
  %139 = vst [vmem:[#allocation2 + $0x18] sm:$0xff] %v131
  %140 = vst [vmem:[#allocation2 + $0x20] sm:$0xff] %v132
  %141 = vst [vmem:[#allocation2 + $0x28] sm:$0xff] %v133
  %142 = vst [vmem:[#allocation2 + $0x30] sm:$0xff] %v134
  %143 = vst [vmem:[#allocation2 + $0x38] sm:$0xff] %v135
  %v144 = vmul.f32 %v78, 32.0
  %v145 = vmul.f32 %v79, 32.0
  %v146 = vmul.f32 %v80, 32.0
  %v147 = vmul.f32 %v81, 32.0
  %v148 = vmul.f32 %v82, 32.0
  %v149 = vmul.f32 %v83, 32.0
  %v150 = vmul.f32 %v84, 32.0
  %v151 = vmul.f32 %v85, 32.0
  %v152 = vmul.f32 %v86, 32.0
  %v153 = vmul.f32 %v87, 32.0
  %v154 = vmul.f32 %v88, 32.0
  %v155 = vmul.f32 %v89, 32.0
  %v156 = vmul.f32 %v90, 32.0
  %v157 = vmul.f32 %v91, 32.0
  %v158 = vmul.f32 %v92, 32.0
  %v159 = vmul.f32 %v93, 32.0
  %v160 = vsub.f32 %v43, %v144
  %v161 = vsub.f32 %v44, %v145
  %v162 = vsub.f32 %v45, %v146
  %v163 = vsub.f32 %v46, %v147
  %v164 = vsub.f32 %v47, %v148
  %v165 = vsub.f32 %v48, %v149
  %v166 = vsub.f32 %v49, %v150
  %v167 = vsub.f32 %v50, %v151
  %v168 = vsub.f32 %v51, %v152
  %v169 = vsub.f32 %v52, %v153
  %v170 = vsub.f32 %v53, %v154
  %v171 = vsub.f32 %v54, %v155
  %v172 = vsub.f32 %v55, %v156
  %v173 = vsub.f32 %v56, %v157
  %v174 = vsub.f32 %v57, %v158
  %v175 = vsub.f32 %v58, %v159
  %v176 = vmul.f32 %v95, 32.0
  %v177 = vsub.f32 %v61, %v176
  %vm178 = vcmp.eq.f32.partialorder %v160, %v177
  %vm179 = vcmp.eq.f32.partialorder %v161, %v177
  %vm180 = vcmp.eq.f32.partialorder %v162, %v177
  %vm181 = vcmp.eq.f32.partialorder %v163, %v177
  %vm182 = vcmp.eq.f32.partialorder %v164, %v177
  %vm183 = vcmp.eq.f32.partialorder %v165, %v177
  %vm184 = vcmp.eq.f32.partialorder %v166, %v177
  %vm185 = vcmp.eq.f32.partialorder %v167, %v177
  %vm186 = vcmp.eq.f32.partialorder %v168, %v177
  %vm187 = vcmp.eq.f32.partialorder %v169, %v177
  %vm188 = vcmp.eq.f32.partialorder %v170, %v177
  %vm189 = vcmp.eq.f32.partialorder %v171, %v177
  %vm190 = vcmp.eq.f32.partialorder %v172, %v177
  %vm191 = vcmp.eq.f32.partialorder %v173, %v177
  %vm192 = vcmp.eq.f32.partialorder %v174, %v177
  %vm193 = vcmp.eq.f32.partialorder %v175, %v177
  %v194 = vsel %vm178, 1.0, 0.0
  %v195 = vsel %vm179, 1.0, 0.0
  %v196 = vsel %vm180, 1.0, 0.0
  %v197 = vsel %vm181, 1.0, 0.0
  %v198 = vsel %vm182, 1.0, 0.0
  %v199 = vsel %vm183, 1.0, 0.0
  %v200 = vsel %vm184, 1.0, 0.0
  %v201 = vsel %vm185, 1.0, 0.0
  %v202 = vsel %vm186, 1.0, 0.0
  %v203 = vsel %vm187, 1.0, 0.0
  %v204 = vsel %vm188, 1.0, 0.0
  %v205 = vsel %vm189, 1.0, 0.0
  %v206 = vsel %vm190, 1.0, 0.0
  %v207 = vsel %vm191, 1.0, 0.0
  %v208 = vsel %vm192, 1.0, 0.0
  %v209 = vsel %vm193, 1.0, 0.0
  %v210 = vpack.c.bf16 %v195, %v194
  %v211 = vpack.c.bf16 %v197, %v196
  %v212 = vpack.c.bf16 %v199, %v198
  %v213 = vpack.c.bf16 %v201, %v200
  %v214 = vpack.c.bf16 %v203, %v202
  %v215 = vpack.c.bf16 %v205, %v204
  %v216 = vpack.c.bf16 %v207, %v206
  %v217 = vpack.c.bf16 %v209, %v208
  %218 = vst [vmem:[#allocation3] sm:$0xff] %v210
  %219 = vst [vmem:[#allocation3 + $0x8] sm:$0xff] %v211
  %220 = vst [vmem:[#allocation3 + $0x10] sm:$0xff] %v212
  %221 = vst [vmem:[#allocation3 + $0x18] sm:$0xff] %v213
  %222 = vst [vmem:[#allocation3 + $0x20] sm:$0xff] %v214
  %223 = vst [vmem:[#allocation3 + $0x28] sm:$0xff] %v215
  %224 = vst [vmem:[#allocation3 + $0x30] sm:$0xff] %v216
  %225 = vst [vmem:[#allocation3 + $0x38] sm:$0xff] %v217
  %v226 = vld [vmem:[%s0] sm:$0xff]
  %v227 = vld [vmem:[%s0 + $0x8] sm:$0xff]
  %v228 = vld [vmem:[%s0 + $0x10] sm:$0xff]
  %v229 = vld [vmem:[%s1] sm:$0xff]
  %v230 = vld [vmem:[%s1 + $0x8] sm:$0xff]
  %v231 = vld [vmem:[%s1 + $0x10] sm:$0xff]
  %v232 = vld [vmem:[%s1 + $0x18] sm:$0xff]
  %v233 = vld [vmem:[%s1 + $0x20] sm:$0xff]
  %v234 = vld [vmem:[%s1 + $0x28] sm:$0xff]
  %v235 = vld [vmem:[%s1 + $0x30] sm:$0xff]
  %v236 = vld [vmem:[%s1 + $0x38] sm:$0xff]
  %v237 = vld [vmem:[%s1 + $0x40] sm:$0xff]
  %v238 = vld [vmem:[%s1 + $0x48] sm:$0xff]
  %v239 = vld [vmem:[%s1 + $0x50] sm:$0xff]
  %v240 = vld [vmem:[%s1 + $0x58] sm:$0xff]
  %v241 = vld [vmem:[%s1 + $0x60] sm:$0xff]
  %v242 = vld [vmem:[%s1 + $0x68] sm:$0xff]
  %v243 = vld [vmem:[%s1 + $0x70] sm:$0xff]
  %v244 = vld [vmem:[%s1 + $0x78] sm:$0xff]
  %v245 = vld [vmem:[%s1 + $0x80] sm:$0xff]
  %v246 = vld [vmem:[%s1 + $0x88] sm:$0xff]
  %v247 = vld [vmem:[%s1 + $0x90] sm:$0xff]
  %v248 = vld [vmem:[%s1 + $0x98] sm:$0xff]
  %v249 = vld [vmem:[%s1 + $0xa0] sm:$0xff]
  %v250 = vld [vmem:[%s1 + $0xa8] sm:$0xff]
  %v251 = vld [vmem:[%s1 + $0xb0] sm:$0xff]
  %v252 = vld [vmem:[%s1 + $0xb8] sm:$0xff]
  %v253 = vld [vmem:[%s1 + $0xc0] sm:$0xff]
  %v254 = vld [vmem:[%s1 + $0xc8] sm:$0xff]
  %v255 = vld [vmem:[%s1 + $0xd0] sm:$0xff]
  %v256 = vld [vmem:[%s1 + $0xd8] sm:$0xff]
  %v257 = vld [vmem:[%s1 + $0xe0] sm:$0xff]
  %v258 = vld [vmem:[%s1 + $0xe8] sm:$0xff]
  %v259 = vld [vmem:[%s1 + $0xf0] sm:$0xff]
  %v260 = vld [vmem:[%s1 + $0xf8] sm:$0xff]
  %261 = vmatprep.subr.mxu0 %v230
  %262 = vmatpush1.msra.mxu0 %v229
  %263 = vmatprep.subr.mxu0 %v232
  %264 = vmatpush1.msra.mxu0 %v231
  %265 = vmatprep.subr.mxu0 %v234
  %266 = vmatpush1.msra.mxu0 %v233
  %267 = vmatprep.subr.mxu0 %v236
  %268 = vmatpush1.msra.mxu0 %v235
  %269 = vmatprep.subr.mxu0 %v238
  %270 = vmatpush1.msra.mxu0 %v237
  %271 = vmatprep.subr.mxu0 %v240
  %272 = vmatpush1.msra.mxu0 %v239
  %273 = vmatprep.subr.mxu0 %v242
  %274 = vmatpush1.msra.mxu0 %v241
  %275 = vmatprep.subr.mxu0 %v244
  %276 = vmatpush1.msra.mxu0 %v243
  %277 = vmatprep.subr.mxu0 %v246
  %278 = vmatpush1.msra.mxu0 %v245
  %279 = vmatprep.subr.mxu0 %v248
  %280 = vmatpush1.msra.mxu0 %v247
  %281 = vmatprep.subr.mxu0 %v250
  %282 = vmatpush1.msra.mxu0 %v249
  %283 = vmatprep.subr.mxu0 %v252
  %284 = vmatpush1.msra.mxu0 %v251
  %285 = vmatprep.subr.mxu0 %v254
  %286 = vmatpush1.msra.mxu0 %v253
  %287 = vmatprep.subr.mxu0 %v256
  %288 = vmatpush1.msra.mxu0 %v255
  %289 = vmatprep.subr.mxu0 %v258
  %290 = vmatpush1.msra.mxu0 %v257
  %291 = vmatprep.subr.mxu0 %v260
  %292 = vmatpush1.msra.mxu0 %v259
  %293 = vmatprep.subr.mxu0 0.0
  %294 = vmatpush1.msra.mxu0 0.0
  %295 = vmatprep.subr.mxu0 0.0
  %296 = vmatpush1.msra.mxu0 0.0
  %297 = vmatprep.subr.mxu0 0.0
  %298 = vmatpush1.msra.mxu0 0.0
  %299 = vmatprep.subr.mxu0 0.0
  %300 = vmatpush1.msra.mxu0 0.0
  %301 = vmatprep.subr.mxu0 0.0
  %302 = vmatpush1.msra.mxu0 0.0
  %303 = vmatprep.subr.mxu0 0.0
  %304 = vmatpush1.msra.mxu0 0.0
  %305 = vmatprep.subr.mxu0 0.0
  %306 = vmatpush1.msra.mxu0 0.0
  %307 = vmatprep.subr.mxu0 0.0
  %308 = vmatpush1.msra.mxu0 0.0
  %309 = vmatprep.subr.mxu0 0.0
  %310 = vmatpush1.msra.mxu0 0.0
  %311 = vmatprep.subr.mxu0 0.0
  %312 = vmatpush1.msra.mxu0 0.0
  %313 = vmatprep.subr.mxu0 0.0
  %314 = vmatpush1.msra.mxu0 0.0
  %315 = vmatprep.subr.mxu0 0.0
  %316 = vmatpush1.msra.mxu0 0.0
  %317 = vmatprep.subr.mxu0 0.0
  %318 = vmatpush1.msra.mxu0 0.0
  %319 = vmatprep.subr.mxu0 0.0
  %320 = vmatpush1.msra.mxu0 0.0
  %321 = vmatprep.subr.mxu0 0.0
  %322 = vmatpush1.msra.mxu0 0.0
  %323 = vmatprep.subr.mxu0 0.0
  %324 = vmatpush1.msra.mxu0 0.0
  %325 = vmatprep.mubr.f32.mxu0 0.0
  %326 = vmatmul.mubr.f32.gmra.mrb[0].mxu0 %v226
  %v327 = vpop.f32.mrb[0].mxu0
  %v328 = vadd.f32 0.0, %v327
  %v329 = vpop.f32.mrb[0].mxu0
  %v330 = vadd.f32 0.0, %v329
  %331 = vmatprep.mubr.f32.mxu0 0.0
  %332 = vmatmul.mubr.f32.gmra.mrb[0].mxu0 %v227
  %v333 = vpop.f32.mrb[0].mxu0
  %v334 = vadd.f32 0.0, %v333
  %v335 = vpop.f32.mrb[0].mxu0
  %v336 = vadd.f32 0.0, %v335
  %337 = vmatprep.mubr.f32.mxu0 0.0
  %338 = vmatmul.mubr.f32.gmra.mrb[0].mxu0 %v228
  %v339 = vpop.f32.mrb[0].mxu0
  %v340 = vadd.f32 0.0, %v339
  %v341 = vpop.f32.mrb[0].mxu0
  %v342 = vadd.f32 0.0, %v341
  %343 = vdwg.mxu0
  %v344 = vld [vmem:[%s2] sm:$0xff]
  %v345 = vld [vmem:[%s2 + $0x8] sm:$0xff]
  %v346 = vld [vmem:[%s2 + $0x10] sm:$0xff]
  %v347 = vld [vmem:[%s2 + $0x18] sm:$0xff]
  %vm348 = vcmask 392192
  %v350 = vsel %vm348, %v344, 0
  %v353 = vsel %vm348, %v345, 0
  %v356 = vsel %vm348, %v346, 0
  %v359 = vsel %vm348, %v347, 0
  %361 = vmatprep.subr.mxu0 0.0
  %362 = vmatpush1.msra.mxu0 %v328
  %363 = vmatprep.subr.mxu0 0.0
  %364 = vmatpush1.msra.mxu0 %v334
  %365 = vmatprep.subr.mxu0 0.0
  %366 = vmatpush1.msra.mxu0 %v340
  %367 = vmatprep.subr.mxu0 0.0
  %368 = vmatpush1.msra.mxu0 %v330
  %369 = vmatprep.subr.mxu0 0.0
  %370 = vmatpush1.msra.mxu0 %v336
  %371 = vmatprep.subr.mxu0 0.0
  %372 = vmatpush1.msra.mxu0 %v342
  %373 = vmatprep.subr.mxu0 0.0
  %374 = vmatpush1.msra.mxu0 0.0
  %375 = vmatprep.subr.mxu0 0.0
  %376 = vmatpush1.msra.mxu0 0.0
  %377 = vmatprep.subr.mxu0 0.0
  %378 = vmatpush1.msra.mxu0 0.0
  %379 = vmatprep.subr.mxu0 0.0
  %380 = vmatpush1.msra.mxu0 0.0
  %381 = vmatprep.subr.mxu0 0.0
  %382 = vmatpush1.msra.mxu0 0.0
  %383 = vmatprep.subr.mxu0 0.0
  %384 = vmatpush1.msra.mxu0 0.0
  %385 = vmatprep.subr.mxu0 0.0
  %386 = vmatpush1.msra.mxu0 0.0
  %387 = vmatprep.subr.mxu0 0.0
  %388 = vmatpush1.msra.mxu0 0.0
  %389 = vmatprep.subr.mxu0 0.0
  %390 = vmatpush1.msra.mxu0 0.0
  %391 = vmatprep.subr.mxu0 0.0
  %392 = vmatpush1.msra.mxu0 0.0
  %393 = vmatprep.subr.mxu0 0.0
  %394 = vmatpush1.msra.mxu0 0.0
  %395 = vmatprep.subr.mxu0 0.0
  %396 = vmatpush1.msra.mxu0 0.0
  %397 = vmatprep.subr.mxu0 0.0
  %398 = vmatpush1.msra.mxu0 0.0
  %399 = vmatprep.subr.mxu0 0.0
  %400 = vmatpush1.msra.mxu0 0.0
  %401 = vmatprep.subr.mxu0 0.0
  %402 = vmatpush1.msra.mxu0 0.0
  %403 = vmatprep.subr.mxu0 0.0
  %404 = vmatpush1.msra.mxu0 0.0
  %405 = vmatprep.subr.mxu0 0.0
  %406 = vmatpush1.msra.mxu0 0.0
  %407 = vmatprep.subr.mxu0 0.0
  %408 = vmatpush1.msra.mxu0 0.0
  %409 = vmatprep.subr.mxu0 0.0
  %410 = vmatpush1.msra.mxu0 0.0
  %411 = vmatprep.subr.mxu0 0.0
  %412 = vmatpush1.msra.mxu0 0.0
  %413 = vmatprep.subr.mxu0 0.0
  %414 = vmatpush1.msra.mxu0 0.0
  %415 = vmatprep.subr.mxu0 0.0
  %416 = vmatpush1.msra.mxu0 0.0
  %417 = vmatprep.subr.mxu0 0.0
  %418 = vmatpush1.msra.mxu0 0.0
  %419 = vmatprep.subr.mxu0 0.0
  %420 = vmatpush1.msra.mxu0 0.0
  %421 = vmatprep.subr.mxu0 0.0
  %422 = vmatpush1.msra.mxu0 0.0
  %423 = vmatprep.subr.mxu0 0.0
  %424 = vmatpush1.msra.mxu0 0.0
  %425 = vmatprep.mubr.f32.mxu0 0.0
  %426 = vmatmul.mubr.f32.gmra.mrb[0].mxu0 %v350
  %v427 = vpop.f32.mrb[0].mxu0
  %v428 = vadd.f32 0.0, %v427
  %v429 = vpop.f32.mrb[0].mxu0
  %430 = vmatprep.mubr.f32.mxu0 0.0
  %431 = vmatmul.mubr.f32.gmra.mrb[0].mxu0 %v353
  %v432 = vpop.f32.mrb[0].mxu0
  %v433 = vadd.f32 0.0, %v432
  %v434 = vpop.f32.mrb[0].mxu0
  %435 = vmatprep.mubr.f32.mxu0 0.0
  %436 = vmatmul.mubr.f32.gmra.mrb[0].mxu0 %v356
  %v437 = vpop.f32.mrb[0].mxu0
  %v438 = vadd.f32 0.0, %v437
  %v439 = vpop.f32.mrb[0].mxu0
  %440 = vmatprep.mubr.f32.mxu0 0.0
  %441 = vmatmul.mubr.f32.gmra.mrb[0].mxu0 %v359
  %v442 = vpop.f32.mrb[0].mxu0
  %v443 = vadd.f32 0.0, %v442
  %v444 = vpop.f32.mrb[0].mxu0
  %445 = vdwg.mxu0
  %v446 = vmul.f32 %v428, %v428
  %v447 = vmul.f32 %v433, %v433
  %v448 = vmul.f32 %v438, %v438
  %v449 = vmul.f32 %v443, %v443
  %v450 = vpack.c.bf16 %v447, %v446
  %v451 = vpack.c.bf16 %v449, %v448
  %v452 = vld [vmem:[#allocation3] sm:$0xff]
  %v453 = vld [vmem:[#allocation3 + $0x8] sm:$0xff]
  %v454 = vld [vmem:[#allocation3 + $0x10] sm:$0xff]
  %v455 = vld [vmem:[#allocation3 + $0x18] sm:$0xff]
  %v456 = vld [vmem:[#allocation3 + $0x20] sm:$0xff]
  %v457 = vld [vmem:[#allocation3 + $0x28] sm:$0xff]
  %v458 = vld [vmem:[#allocation3 + $0x30] sm:$0xff]
  %v459 = vld [vmem:[#allocation3 + $0x38] sm:$0xff]
  %460 = vmatprep.subr.bf16.mxu0 0
  %461 = vmatpush1.bf16.msra.mxu0 %v452
  %462 = vmatprep.subr.bf16.mxu0 0
  %463 = vmatpush1.bf16.msra.mxu0 %v453
  %464 = vmatprep.subr.bf16.mxu0 0
  %465 = vmatpush1.bf16.msra.mxu0 %v454
  %466 = vmatprep.subr.bf16.mxu0 0
  %467 = vmatpush1.bf16.msra.mxu0 %v455
  %468 = vmatprep.subr.bf16.mxu0 0
  %469 = vmatpush1.bf16.msra.mxu0 %v456
  %470 = vmatprep.subr.bf16.mxu0 0
  %471 = vmatpush1.bf16.msra.mxu0 %v457
  %472 = vmatprep.subr.bf16.mxu0 0
  %473 = vmatpush1.bf16.msra.mxu0 %v458
  %474 = vmatprep.subr.bf16.mxu0 0
  %475 = vmatpush1.bf16.msra.mxu0 %v459
  %476 = vmatprep.subr.bf16.mxu0 0
  %477 = vmatpush1.bf16.msra.mxu0 0
  %478 = vmatprep.subr.bf16.mxu0 0
  %479 = vmatpush1.bf16.msra.mxu0 0
  %480 = vmatprep.subr.bf16.mxu0 0
  %481 = vmatpush1.bf16.msra.mxu0 0
  %482 = vmatprep.subr.bf16.mxu0 0
  %483 = vmatpush1.bf16.msra.mxu0 0
  %484 = vmatprep.subr.bf16.mxu0 0
  %485 = vmatpush1.bf16.msra.mxu0 0
  %486 = vmatprep.subr.bf16.mxu0 0
  %487 = vmatpush1.bf16.msra.mxu0 0
  %488 = vmatprep.subr.bf16.mxu0 0
  %489 = vmatpush1.bf16.msra.mxu0 0
  %490 = vmatprep.subr.bf16.mxu0 0
  %491 = vmatpush1.bf16.msra.mxu0 0
  %492 = vmatprep.mubr.bf16.mxu0 0
  %493 = vmatmul.mubr.bf16.gmra.mrb[0].mxu0 %v450
  %v494 = vpop.f32.mrb[0].mxu0
  %v495 = vadd.f32 0.0, %v494
  %v496 = vpop.f32.mrb[0].mxu0
  %v497 = vpop.f32.mrb[0].mxu0
  %v498 = vadd.f32 0.0, %v497
  %v499 = vpop.f32.mrb[0].mxu0
  %500 = vmatprep.mubr.bf16.mxu0 0
  %501 = vmatmul.mubr.bf16.gmra.mrb[0].mxu0 %v451
  %v502 = vpop.f32.mrb[0].mxu0
  %v503 = vadd.f32 0.0, %v502
  %v504 = vpop.f32.mrb[0].mxu0
  %v505 = vpop.f32.mrb[0].mxu0
  %v506 = vadd.f32 0.0, %v505
  %v507 = vpop.f32.mrb[0].mxu0
  %508 = vdwg.mxu0
  %v509 = vmax.f32 %v495, 1e-24
  %v510 = vmax.f32 %v498, 1e-24
  %v511 = vmax.f32 %v503, 1e-24
  %v512 = vmax.f32 %v506, 1e-24
  %v513 = vrsqrt.pop %v509
  %v514 = vrsqrt.pop %v510
  %v515 = vrsqrt.pop %v511
  %v516 = vrsqrt.pop %v512
  %v517 = vmul.f32 %v428, %v513
  %v518 = vmul.f32 %v433, %v514
  %v519 = vmul.f32 %v438, %v515
  %v520 = vmul.f32 %v443, %v516
  %v521 = vld [vmem:[%s3] sm:$0xff]
  %v522 = vld [vmem:[%s3 + $0x8] sm:$0xff]
  %v523 = vld [vmem:[%s3 + $0x10] sm:$0xff]
  %v524 = vld [vmem:[%s3 + $0x18] sm:$0xff]
  %v525 = vld [vmem:[%s3 + $0x20] sm:$0xff]
  %vm526 = vcmask 195584
  %v528 = vsel %vm526, %v521, 0
  %v531 = vsel %vm526, %v522, 0
  %v534 = vsel %vm526, %v523, 0
  %v537 = vsel %vm526, %v524, 0
  %v540 = vsel %vm526, %v525, 0
  %542 = vmatprep.subr.mxu0 0.0
  %543 = vmatpush1.msra.mxu0 %v226
  %544 = vmatprep.subr.mxu0 0.0
  %545 = vmatpush1.msra.mxu0 %v227
  %546 = vmatprep.subr.mxu0 0.0
  %547 = vmatpush1.msra.mxu0 %v228
  %548 = vmatprep.subr.mxu0 0.0
  %549 = vmatpush1.msra.mxu0 0.0
  %550 = vmatprep.subr.mxu0 0.0
  %551 = vmatpush1.msra.mxu0 0.0
  %552 = vmatprep.subr.mxu0 0.0
  %553 = vmatpush1.msra.mxu0 0.0
  %554 = vmatprep.subr.mxu0 0.0
  %555 = vmatpush1.msra.mxu0 0.0
  %556 = vmatprep.subr.mxu0 0.0
  %557 = vmatpush1.msra.mxu0 0.0
  %558 = vmatprep.subr.mxu0 0.0
  %559 = vmatpush1.msra.mxu0 0.0
  %560 = vmatprep.subr.mxu0 0.0
  %561 = vmatpush1.msra.mxu0 0.0
  %562 = vmatprep.subr.mxu0 0.0
  %563 = vmatpush1.msra.mxu0 0.0
  %564 = vmatprep.subr.mxu0 0.0
  %565 = vmatpush1.msra.mxu0 0.0
  %566 = vmatprep.subr.mxu0 0.0
  %567 = vmatpush1.msra.mxu0 0.0
  %568 = vmatprep.subr.mxu0 0.0
  %569 = vmatpush1.msra.mxu0 0.0
  %570 = vmatprep.subr.mxu0 0.0
  %571 = vmatpush1.msra.mxu0 0.0
  %572 = vmatprep.subr.mxu0 0.0
  %573 = vmatpush1.msra.mxu0 0.0
  %574 = vmatprep.subr.mxu0 0.0
  %575 = vmatpush1.msra.mxu0 0.0
  %576 = vmatprep.subr.mxu0 0.0
  %577 = vmatpush1.msra.mxu0 0.0
  %578 = vmatprep.subr.mxu0 0.0
  %579 = vmatpush1.msra.mxu0 0.0
  %580 = vmatprep.subr.mxu0 0.0
  %581 = vmatpush1.msra.mxu0 0.0
  %582 = vmatprep.subr.mxu0 0.0
  %583 = vmatpush1.msra.mxu0 0.0
  %584 = vmatprep.subr.mxu0 0.0
  %585 = vmatpush1.msra.mxu0 0.0
  %586 = vmatprep.subr.mxu0 0.0
  %587 = vmatpush1.msra.mxu0 0.0
  %588 = vmatprep.subr.mxu0 0.0
  %589 = vmatpush1.msra.mxu0 0.0
  %590 = vmatprep.subr.mxu0 0.0
  %591 = vmatpush1.msra.mxu0 0.0
  %592 = vmatprep.subr.mxu0 0.0
  %593 = vmatpush1.msra.mxu0 0.0
  %594 = vmatprep.subr.mxu0 0.0
  %595 = vmatpush1.msra.mxu0 0.0
  %596 = vmatprep.subr.mxu0 0.0
  %597 = vmatpush1.msra.mxu0 0.0
  %598 = vmatprep.subr.mxu0 0.0
  %599 = vmatpush1.msra.mxu0 0.0
  %600 = vmatprep.subr.mxu0 0.0
  %601 = vmatpush1.msra.mxu0 0.0
  %602 = vmatprep.subr.mxu0 0.0
  %603 = vmatpush1.msra.mxu0 0.0
  %604 = vmatprep.subr.mxu0 0.0
  %605 = vmatpush1.msra.mxu0 0.0
  %606 = vmatprep.mubr.f32.mxu0 0.0
  %607 = vmatmul.mubr.f32.gmra.mrb[0].mxu0 %v528
  %v608 = vpop.f32.mrb[0].mxu0
  %v609 = vadd.f32 0.0, %v608
  %v610 = vpop.f32.mrb[0].mxu0
  %611 = vmatprep.mubr.f32.mxu0 0.0
  %612 = vmatmul.mubr.f32.gmra.mrb[0].mxu0 %v531
  %v613 = vpop.f32.mrb[0].mxu0
  %v614 = vadd.f32 0.0, %v613
  %v615 = vpop.f32.mrb[0].mxu0
  %616 = vmatprep.mubr.f32.mxu0 0.0
  %617 = vmatmul.mubr.f32.gmra.mrb[0].mxu0 %v534
  %v618 = vpop.f32.mrb[0].mxu0
  %v619 = vadd.f32 0.0, %v618
  %v620 = vpop.f32.mrb[0].mxu0
  %621 = vmatprep.mubr.f32.mxu0 0.0
  %622 = vmatmul.mubr.f32.gmra.mrb[0].mxu0 %v537
  %v623 = vpop.f32.mrb[0].mxu0
  %v624 = vadd.f32 0.0, %v623
  %v625 = vpop.f32.mrb[0].mxu0
  %626 = vmatprep.mubr.f32.mxu0 0.0
  %627 = vmatmul.mubr.f32.gmra.mrb[0].mxu0 %v540
  %v628 = vpop.f32.mrb[0].mxu0
  %v629 = vadd.f32 0.0, %v628
  %v630 = vpop.f32.mrb[0].mxu0
  %631 = vdwg.mxu0
  %v632 = vmul.f32 %v609, %v609
  %v633 = vmul.f32 %v614, %v614
  %v634 = vmul.f32 %v619, %v619
  %v635 = vmul.f32 %v624, %v624
  %v636 = vmul.f32 %v629, %v629
  %v637 = vpack.c.bf16 %v633, %v632
  %v638 = vpack.c.bf16 %v635, %v634
  %v639 = vpack.c.bf16 %v636, %v636
  %640 = vmatprep.subr.bf16.mxu0 0
  %641 = vmatpush1.bf16.msra.mxu0 %v452
  %642 = vmatprep.subr.bf16.mxu0 0
  %643 = vmatpush1.bf16.msra.mxu0 %v453
  %644 = vmatprep.subr.bf16.mxu0 0
  %645 = vmatpush1.bf16.msra.mxu0 %v454
  %646 = vmatprep.subr.bf16.mxu0 0
  %647 = vmatpush1.bf16.msra.mxu0 %v455
  %648 = vmatprep.subr.bf16.mxu0 0
  %649 = vmatpush1.bf16.msra.mxu0 %v456
  %650 = vmatprep.subr.bf16.mxu0 0
  %651 = vmatpush1.bf16.msra.mxu0 %v457
  %652 = vmatprep.subr.bf16.mxu0 0
  %653 = vmatpush1.bf16.msra.mxu0 %v458
  %654 = vmatprep.subr.bf16.mxu0 0
  %655 = vmatpush1.bf16.msra.mxu0 %v459
  %656 = vmatprep.subr.bf16.mxu0 0
  %657 = vmatpush1.bf16.msra.mxu0 0
  %658 = vmatprep.subr.bf16.mxu0 0
  %659 = vmatpush1.bf16.msra.mxu0 0
  %660 = vmatprep.subr.bf16.mxu0 0
  %661 = vmatpush1.bf16.msra.mxu0 0
  %662 = vmatprep.subr.bf16.mxu0 0
  %663 = vmatpush1.bf16.msra.mxu0 0
  %664 = vmatprep.subr.bf16.mxu0 0
  %665 = vmatpush1.bf16.msra.mxu0 0
  %666 = vmatprep.subr.bf16.mxu0 0
  %667 = vmatpush1.bf16.msra.mxu0 0
  %668 = vmatprep.subr.bf16.mxu0 0
  %669 = vmatpush1.bf16.msra.mxu0 0
  %670 = vmatprep.subr.bf16.mxu0 0
  %671 = vmatpush1.bf16.msra.mxu0 0
  %672 = vmatprep.mubr.bf16.mxu0 0
  %673 = vmatmul.mubr.bf16.gmra.mrb[0].mxu0 %v637
  %v674 = vpop.f32.mrb[0].mxu0
  %v675 = vadd.f32 0.0, %v674
  %v676 = vpop.f32.mrb[0].mxu0
  %v677 = vpop.f32.mrb[0].mxu0
  %v678 = vadd.f32 0.0, %v677
  %v679 = vpop.f32.mrb[0].mxu0
  %680 = vmatprep.mubr.bf16.mxu0 0
  %681 = vmatmul.mubr.bf16.gmra.mrb[0].mxu0 %v638
  %v682 = vpop.f32.mrb[0].mxu0
  %v683 = vadd.f32 0.0, %v682
  %v684 = vpop.f32.mrb[0].mxu0
  %v685 = vpop.f32.mrb[0].mxu0
  %v686 = vadd.f32 0.0, %v685
  %v687 = vpop.f32.mrb[0].mxu0
  %688 = vmatprep.mubr.bf16.mxu0 0
  %689 = vmatmul.mubr.bf16.gmra.mrb[0].mxu0 %v639
  %v690 = vpop.f32.mrb[0].mxu0
  %v691 = vadd.f32 0.0, %v690
  %v692 = vpop.f32.mrb[0].mxu0
  %v693 = vpop.f32.mrb[0].mxu0
  %v694 = vpop.f32.mrb[0].mxu0
  %695 = vdwg.mxu0
  %v696 = vmax.f32 %v675, 1e-24
  %v697 = vmax.f32 %v678, 1e-24
  %v698 = vmax.f32 %v683, 1e-24
  %v699 = vmax.f32 %v686, 1e-24
  %v700 = vmax.f32 %v691, 1e-24
  %v701 = vrsqrt.pop %v696
  %v702 = vrsqrt.pop %v697
  %v703 = vrsqrt.pop %v698
  %v704 = vrsqrt.pop %v699
  %v705 = vrsqrt.pop %v700
  %v706 = vmul.f32 %v609, %v701
  %v707 = vmul.f32 %v614, %v702
  %v708 = vmul.f32 %v619, %v703
  %v709 = vmul.f32 %v624, %v704
  %v710 = vmul.f32 %v629, %v705
  %v711 = vmul.f32 %v517, %v706
  %v712 = vmul.f32 %v518, %v707
  %v713 = vmul.f32 %v519, %v708
  %v714 = vmul.f32 %v520, %v709
  %v715 = vpack.c.bf16 %v712, %v711
  %v716 = vpack.c.bf16 %v714, %v713
  %v717 = vld [vmem:[#allocation2] sm:$0xff]
  %v718 = vld [vmem:[#allocation2 + $0x8] sm:$0xff]
  %v719 = vld [vmem:[#allocation2 + $0x10] sm:$0xff]
  %v720 = vld [vmem:[#allocation2 + $0x18] sm:$0xff]
  %v721 = vld [vmem:[#allocation2 + $0x20] sm:$0xff]
  %v722 = vld [vmem:[#allocation2 + $0x28] sm:$0xff]
  %v723 = vld [vmem:[#allocation2 + $0x30] sm:$0xff]
  %v724 = vld [vmem:[#allocation2 + $0x38] sm:$0xff]
  %725 = vmatprep.subr.bf16.mxu0 0
  %726 = vmatpush1.bf16.msra.mxu0 %v717
  %727 = vmatprep.subr.bf16.mxu0 0
  %728 = vmatpush1.bf16.msra.mxu0 %v718
  %729 = vmatprep.subr.bf16.mxu0 0
  %730 = vmatpush1.bf16.msra.mxu0 %v719
  %731 = vmatprep.subr.bf16.mxu0 0
  %732 = vmatpush1.bf16.msra.mxu0 %v720
  %733 = vmatprep.subr.bf16.mxu0 0
  %734 = vmatpush1.bf16.msra.mxu0 %v721
  %735 = vmatprep.subr.bf16.mxu0 0
  %736 = vmatpush1.bf16.msra.mxu0 %v722
  %737 = vmatprep.subr.bf16.mxu0 0
  %738 = vmatpush1.bf16.msra.mxu0 %v723
  %739 = vmatprep.subr.bf16.mxu0 0
  %740 = vmatpush1.bf16.msra.mxu0 %v724
  %741 = vmatprep.subr.bf16.mxu0 0
  %742 = vmatpush1.bf16.msra.mxu0 0
  %743 = vmatprep.subr.bf16.mxu0 0
  %744 = vmatpush1.bf16.msra.mxu0 0
  %745 = vmatprep.subr.bf16.mxu0 0
  %746 = vmatpush1.bf16.msra.mxu0 0
  %747 = vmatprep.subr.bf16.mxu0 0
  %748 = vmatpush1.bf16.msra.mxu0 0
  %749 = vmatprep.subr.bf16.mxu0 0
  %750 = vmatpush1.bf16.msra.mxu0 0
  %751 = vmatprep.subr.bf16.mxu0 0
  %752 = vmatpush1.bf16.msra.mxu0 0
  %753 = vmatprep.subr.bf16.mxu0 0
  %754 = vmatpush1.bf16.msra.mxu0 0
  %755 = vmatprep.subr.bf16.mxu0 0
  %756 = vmatpush1.bf16.msra.mxu0 0
  %757 = vmatprep.mubr.bf16.mxu0 0
  %758 = vmatmul.mubr.bf16.gmra.mrb[0].mxu0 %v715
  %v759 = vpop.f32.mrb[0].mxu0
  %v760 = vadd.f32 0.0, %v759
  %v761 = vpop.f32.mrb[0].mxu0
  %v762 = vpop.f32.mrb[0].mxu0
  %v763 = vadd.f32 0.0, %v762
  %v764 = vpop.f32.mrb[0].mxu0
  %765 = vmatprep.mubr.bf16.mxu0 0
  %766 = vmatmul.mubr.bf16.gmra.mrb[0].mxu0 %v716
  %v767 = vpop.f32.mrb[0].mxu0
  %v768 = vadd.f32 0.0, %v767
  %v769 = vpop.f32.mrb[0].mxu0
  %v770 = vpop.f32.mrb[0].mxu0
  %v771 = vadd.f32 0.0, %v770
  %v772 = vpop.f32.mrb[0].mxu0
  %773 = vdwg.mxu0
  %774 = vmax.xlane.f32.xlu0 %v760
  %v775 = vpop.xlane.xlu0 %774
  %776 = vmax.xlane.f32.xlu0 %v763
  %v777 = vpop.xlane.xlu0 %776
  %778 = vmax.xlane.f32.xlu0 %v768
  %v779 = vpop.xlane.xlu0 %778
  %780 = vmax.xlane.f32.xlu0 %v771
  %v781 = vpop.xlane.xlu0 %780
  %v782 = vsub.f32 %v760, %v775
  %v783 = vsub.f32 %v763, %v777
  %v784 = vsub.f32 %v768, %v779
  %v785 = vsub.f32 %v771, %v781
  %v786 = vmul.f32 %v782, 1.442695
  %v787 = vpow.pop %v786
  %v788 = vmul.f32 %v783, 1.442695
  %v789 = vpow.pop %v788
  %v790 = vmul.f32 %v784, 1.442695
  %v791 = vpow.pop %v790
  %v792 = vmul.f32 %v785, 1.442695
  %v793 = vpow.pop %v792
  %794 = vadd.xlane.f32.xlu0 %v787
  %v795 = vpop.xlane.xlu0 %794
  %796 = vadd.xlane.f32.xlu0 %v789
  %v797 = vpop.xlane.xlu0 %796
  %798 = vadd.xlane.f32.xlu0 %v791
  %v799 = vpop.xlane.xlu0 %798
  %800 = vadd.xlane.f32.xlu0 %v793
  %v801 = vpop.xlane.xlu0 %800
  %v802 = vmul.f32 %v795, 0.03125
  %v803 = vmul.f32 %v797, 0.03125
  %v804 = vmul.f32 %v799, 0.03125
  %v805 = vmul.f32 %v801, 0.03125
  %v806 = vrcp.pop %v802
  %v807 = vmul.f32 %v787, %v806
  %v808 = vrcp.pop %v803
  %v809 = vmul.f32 %v789, %v808
  %v810 = vrcp.pop %v804
  %v811 = vmul.f32 %v791, %v810
  %v812 = vrcp.pop %v805
  %v813 = vmul.f32 %v793, %v812
  %v814 = vmul.f32 %v517, %v807
  %v815 = vmul.f32 %v518, %v809
  %v816 = vmul.f32 %v519, %v811
  %v817 = vmul.f32 %v520, %v813
  %v818 = vld [vmem:[%s5] sm:$0xf]
  %v819 = vld [vmem:[%s5 + $0x4] sm:$0xf]
  %v820 = vpack.c.bf16 %v815, %v814
  %v821 = vpack.c.bf16 %v817, %v816
  %v824 = vunpack.c.l.b16 %v818
  %v825 = vunpack.c.l.b16 %v819
  %v826 = vpack.c.b16 %v825, %v824
  %vm827 = vcmask 261120
  %v829 = vsel %vm827, %v826, 0
  %831 = vmatprep.subr.bf16.mxu0 0
  %832 = vmatpush1.bf16.msra.mxu0 %v820
  %833 = vmatprep.subr.bf16.mxu0 0
  %834 = vmatpush1.bf16.msra.mxu0 %v821
  %835 = vmatprep.subr.bf16.mxu0 0
  %836 = vmatpush1.bf16.msra.mxu0 0
  %837 = vmatprep.subr.bf16.mxu0 0
  %838 = vmatpush1.bf16.msra.mxu0 0
  %839 = vmatprep.subr.bf16.mxu0 0
  %840 = vmatpush1.bf16.msra.mxu0 0
  %841 = vmatprep.subr.bf16.mxu0 0
  %842 = vmatpush1.bf16.msra.mxu0 0
  %843 = vmatprep.subr.bf16.mxu0 0
  %844 = vmatpush1.bf16.msra.mxu0 0
  %845 = vmatprep.subr.bf16.mxu0 0
  %846 = vmatpush1.bf16.msra.mxu0 0
  %847 = vmatprep.subr.bf16.mxu0 0
  %848 = vmatpush1.bf16.msra.mxu0 0
  %849 = vmatprep.subr.bf16.mxu0 0
  %850 = vmatpush1.bf16.msra.mxu0 0
  %851 = vmatprep.subr.bf16.mxu0 0
  %852 = vmatpush1.bf16.msra.mxu0 0
  %853 = vmatprep.subr.bf16.mxu0 0
  %854 = vmatpush1.bf16.msra.mxu0 0
  %855 = vmatprep.subr.bf16.mxu0 0
  %856 = vmatpush1.bf16.msra.mxu0 0
  %857 = vmatprep.subr.bf16.mxu0 0
  %858 = vmatpush1.bf16.msra.mxu0 0
  %859 = vmatprep.subr.bf16.mxu0 0
  %860 = vmatpush1.bf16.msra.mxu0 0
  %861 = vmatprep.subr.bf16.mxu0 0
  %862 = vmatpush1.bf16.msra.mxu0 0
  %863 = vmatprep.mubr.bf16.mxu0 0
  %864 = vmatmul.mubr.bf16.gmra.mrb[0].mxu0 %v829
  %v865 = vpop.f32.mrb[0].mxu0
  %v866 = vadd.f32 1e-15, %v865
  %v867 = vpop.f32.mrb[0].mxu0
  %v868 = vpop.f32.mrb[0].mxu0
  %v869 = vadd.f32 1e-15, %v868
  %v870 = vpop.f32.mrb[0].mxu0
  %871 = vdwg.mxu0
  %v872 = vmul.f32 %v866, %v866
  %v873 = vmul.f32 %v869, %v869
  %v874 = vpack.c.bf16 %v873, %v872
  %875 = vmatprep.subr.bf16.mxu0 0
  %876 = vmatpush1.bf16.msra.mxu0 %v452
  %877 = vmatprep.subr.bf16.mxu0 0
  %878 = vmatpush1.bf16.msra.mxu0 %v453
  %879 = vmatprep.subr.bf16.mxu0 0
  %880 = vmatpush1.bf16.msra.mxu0 %v454
  %881 = vmatprep.subr.bf16.mxu0 0
  %882 = vmatpush1.bf16.msra.mxu0 %v455
  %883 = vmatprep.subr.bf16.mxu0 0
  %884 = vmatpush1.bf16.msra.mxu0 %v456
  %885 = vmatprep.subr.bf16.mxu0 0
  %886 = vmatpush1.bf16.msra.mxu0 %v457
  %887 = vmatprep.subr.bf16.mxu0 0
  %888 = vmatpush1.bf16.msra.mxu0 %v458
  %889 = vmatprep.subr.bf16.mxu0 0
  %890 = vmatpush1.bf16.msra.mxu0 %v459
  %891 = vmatprep.subr.bf16.mxu0 0
  %892 = vmatpush1.bf16.msra.mxu0 0
  %893 = vmatprep.subr.bf16.mxu0 0
  %894 = vmatpush1.bf16.msra.mxu0 0
  %895 = vmatprep.subr.bf16.mxu0 0
  %896 = vmatpush1.bf16.msra.mxu0 0
  %897 = vmatprep.subr.bf16.mxu0 0
  %898 = vmatpush1.bf16.msra.mxu0 0
  %899 = vmatprep.subr.bf16.mxu0 0
  %900 = vmatpush1.bf16.msra.mxu0 0
  %901 = vmatprep.subr.bf16.mxu0 0
  %902 = vmatpush1.bf16.msra.mxu0 0
  %903 = vmatprep.subr.bf16.mxu0 0
  %904 = vmatpush1.bf16.msra.mxu0 0
  %905 = vmatprep.subr.bf16.mxu0 0
  %906 = vmatpush1.bf16.msra.mxu0 0
  %907 = vmatprep.mubr.bf16.mxu0 0
  %908 = vmatmul.mubr.bf16.gmra.mrb[0].mxu0 %v874
  %v909 = vpop.f32.mrb[0].mxu0
  %v910 = vadd.f32 0.0, %v909
  %v911 = vpop.f32.mrb[0].mxu0
  %v912 = vpop.f32.mrb[0].mxu0
  %v913 = vadd.f32 0.0, %v912
  %v914 = vpop.f32.mrb[0].mxu0
  %915 = vdwg.mxu0
  %v916 = vmax.f32 %v910, 1e-24
  %v917 = vmax.f32 %v913, 1e-24
  %v918 = vrsqrt.pop %v916
  %v919 = vrsqrt.pop %v917
  %v920 = vmul.f32 %v866, %v918
  %v921 = vmul.f32 %v869, %v919
  %v922 = vadd.f32 %v920, %v921
  %v923 = vmul.f32 %v922, 0.5
  %v924 = vadd.f32 %v710, %v923
  %v925 = vmul.f32 %v924, %v924
  %v926 = vpack.c.bf16 %v925, %v925
  %927 = vmatprep.subr.bf16.mxu0 0
  %928 = vmatpush1.bf16.msra.mxu0 %v452
  %929 = vmatprep.subr.bf16.mxu0 0
  %930 = vmatpush1.bf16.msra.mxu0 %v453
  %931 = vmatprep.subr.bf16.mxu0 0
  %932 = vmatpush1.bf16.msra.mxu0 %v454
  %933 = vmatprep.subr.bf16.mxu0 0
  %934 = vmatpush1.bf16.msra.mxu0 %v455
  %935 = vmatprep.subr.bf16.mxu0 0
  %936 = vmatpush1.bf16.msra.mxu0 %v456
  %937 = vmatprep.subr.bf16.mxu0 0
  %938 = vmatpush1.bf16.msra.mxu0 %v457
  %939 = vmatprep.subr.bf16.mxu0 0
  %940 = vmatpush1.bf16.msra.mxu0 %v458
  %941 = vmatprep.subr.bf16.mxu0 0
  %942 = vmatpush1.bf16.msra.mxu0 %v459
  %943 = vmatprep.subr.bf16.mxu0 0
  %944 = vmatpush1.bf16.msra.mxu0 0
  %945 = vmatprep.subr.bf16.mxu0 0
  %946 = vmatpush1.bf16.msra.mxu0 0
  %947 = vmatprep.subr.bf16.mxu0 0
  %948 = vmatpush1.bf16.msra.mxu0 0
  %949 = vmatprep.subr.bf16.mxu0 0
  %950 = vmatpush1.bf16.msra.mxu0 0
  %951 = vmatprep.subr.bf16.mxu0 0
  %952 = vmatpush1.bf16.msra.mxu0 0
  %953 = vmatprep.subr.bf16.mxu0 0
  %954 = vmatpush1.bf16.msra.mxu0 0
  %955 = vmatprep.subr.bf16.mxu0 0
  %956 = vmatpush1.bf16.msra.mxu0 0
  %957 = vmatprep.subr.bf16.mxu0 0
  %958 = vmatpush1.bf16.msra.mxu0 0
  %959 = vmatprep.mubr.bf16.mxu0 0
  %960 = vmatmul.mubr.bf16.gmra.mrb[0].mxu0 %v926
  %v961 = vpop.f32.mrb[0].mxu0
  %v962 = vadd.f32 0.0, %v961
  %v963 = vpop.f32.mrb[0].mxu0
  %v964 = vpop.f32.mrb[0].mxu0
  %v965 = vpop.f32.mrb[0].mxu0
  %966 = vdwg.mxu0
  %v967 = vmax.f32 %v962, 1e-24
  %v968 = vrsqrt.pop %v967
  %v969 = vmul.f32 %v924, %v968
  %v970 = vld [vmem:[%s4] sm:$0xf]
  %v971 = vld [vmem:[%s4 + $0x4] sm:$0xf]
  %v972 = vld [vmem:[%s4 + $0x8] sm:$0xf]
  %v973 = vld [vmem:[%s4 + $0xc] sm:$0xf]
  %v974 = vpack.c.bf16 %v969, %v969
  %v979 = vunpack.c.l.b16 %v970
  %v980 = vunpack.c.l.b16 %v971
  %v981 = vunpack.c.l.b16 %v972
  %v982 = vunpack.c.l.b16 %v973
  %v983 = vpack.c.b16 %v980, %v979
  %v984 = vpack.c.b16 %v982, %v981
  %vm985 = vcmask 64512
  %v987 = vsel %vm985, %v983, 0
  %v990 = vsel %vm985, %v984, 0
  %vm992 = vcmask 1043456
  %v994 = vsel %vm992, %v974, 0
  %996 = vmatprep.subr.bf16.mxu0 0
  %997 = vmatpush1.bf16.msra.mxu0 %v994
  %998 = vmatprep.subr.bf16.mxu0 0
  %999 = vmatpush1.bf16.msra.mxu0 0
  %1000 = vmatprep.subr.bf16.mxu0 0
  %1001 = vmatpush1.bf16.msra.mxu0 0
  %1002 = vmatprep.subr.bf16.mxu0 0
  %1003 = vmatpush1.bf16.msra.mxu0 0
  %1004 = vmatprep.subr.bf16.mxu0 0
  %1005 = vmatpush1.bf16.msra.mxu0 0
  %1006 = vmatprep.subr.bf16.mxu0 0
  %1007 = vmatpush1.bf16.msra.mxu0 0
  %1008 = vmatprep.subr.bf16.mxu0 0
  %1009 = vmatpush1.bf16.msra.mxu0 0
  %1010 = vmatprep.subr.bf16.mxu0 0
  %1011 = vmatpush1.bf16.msra.mxu0 0
  %1012 = vmatprep.subr.bf16.mxu0 0
  %1013 = vmatpush1.bf16.msra.mxu0 0
  %1014 = vmatprep.subr.bf16.mxu0 0
  %1015 = vmatpush1.bf16.msra.mxu0 0
  %1016 = vmatprep.subr.bf16.mxu0 0
  %1017 = vmatpush1.bf16.msra.mxu0 0
  %1018 = vmatprep.subr.bf16.mxu0 0
  %1019 = vmatpush1.bf16.msra.mxu0 0
  %1020 = vmatprep.subr.bf16.mxu0 0
  %1021 = vmatpush1.bf16.msra.mxu0 0
  %1022 = vmatprep.subr.bf16.mxu0 0
  %1023 = vmatpush1.bf16.msra.mxu0 0
  %1024 = vmatprep.subr.bf16.mxu0 0
  %1025 = vmatpush1.bf16.msra.mxu0 0
  %1026 = vmatprep.subr.bf16.mxu0 0
  %1027 = vmatpush1.bf16.msra.mxu0 0
  %1028 = vmatprep.mubr.bf16.mxu0 0
  %1029 = vmatmul.mubr.bf16.gmra.mrb[0].mxu0 %v987
  %v1030 = vpop.f32.mrb[0].mxu0
  %v1031 = vadd.f32 0.0, %v1030
  %v1032 = vpop.f32.mrb[0].mxu0
  %v1033 = vpop.f32.mrb[0].mxu0
  %v1034 = vadd.f32 0.0, %v1033
  %v1035 = vpop.f32.mrb[0].mxu0
  %1036 = vmatprep.mubr.bf16.mxu0 0
  %1037 = vmatmul.mubr.bf16.gmra.mrb[0].mxu0 %v990
  %v1038 = vpop.f32.mrb[0].mxu0
  %v1039 = vadd.f32 0.0, %v1038
  %v1040 = vpop.f32.mrb[0].mxu0
  %v1041 = vpop.f32.mrb[0].mxu0
  %v1042 = vadd.f32 0.0, %v1041
  %v1043 = vpop.f32.mrb[0].mxu0
  %1044 = vdwg.mxu0
  %v1045 = vmul.f32 %v517, %v1031
  %v1046 = vmul.f32 %v518, %v1034
  %v1047 = vmul.f32 %v519, %v1039
  %v1048 = vmul.f32 %v520, %v1042
  %v1049 = vpack.c.bf16 %v1046, %v1045
  %v1050 = vpack.c.bf16 %v1048, %v1047
  %1051 = vmatprep.subr.bf16.mxu0 0
  %1052 = vmatpush1.bf16.msra.mxu0 %v717
  %1053 = vmatprep.subr.bf16.mxu0 0
  %1054 = vmatpush1.bf16.msra.mxu0 %v718
  %1055 = vmatprep.subr.bf16.mxu0 0
  %1056 = vmatpush1.bf16.msra.mxu0 %v719
  %1057 = vmatprep.subr.bf16.mxu0 0
  %1058 = vmatpush1.bf16.msra.mxu0 %v720
  %1059 = vmatprep.subr.bf16.mxu0 0
  %1060 = vmatpush1.bf16.msra.mxu0 %v721
  %1061 = vmatprep.subr.bf16.mxu0 0
  %1062 = vmatpush1.bf16.msra.mxu0 %v722
  %1063 = vmatprep.subr.bf16.mxu0 0
  %1064 = vmatpush1.bf16.msra.mxu0 %v723
  %1065 = vmatprep.subr.bf16.mxu0 0
  %1066 = vmatpush1.bf16.msra.mxu0 %v724
  %1067 = vmatprep.subr.bf16.mxu0 0
  %1068 = vmatpush1.bf16.msra.mxu0 0
  %1069 = vmatprep.subr.bf16.mxu0 0
  %1070 = vmatpush1.bf16.msra.mxu0 0
  %1071 = vmatprep.subr.bf16.mxu0 0
  %1072 = vmatpush1.bf16.msra.mxu0 0
  %1073 = vmatprep.subr.bf16.mxu0 0
  %1074 = vmatpush1.bf16.msra.mxu0 0
  %1075 = vmatprep.subr.bf16.mxu0 0
  %1076 = vmatpush1.bf16.msra.mxu0 0
  %1077 = vmatprep.subr.bf16.mxu0 0
  %1078 = vmatpush1.bf16.msra.mxu0 0
  %1079 = vmatprep.subr.bf16.mxu0 0
  %1080 = vmatpush1.bf16.msra.mxu0 0
  %1081 = vmatprep.subr.bf16.mxu0 0
  %1082 = vmatpush1.bf16.msra.mxu0 0
  %1083 = vmatprep.mubr.bf16.mxu0 0
  %1084 = vmatmul.mubr.bf16.gmra.mrb[0].mxu0 %v1049
  %v1085 = vpop.f32.mrb[0].mxu0
  %v1086 = vadd.f32 0.0, %v1085
  %v1087 = vpop.f32.mrb[0].mxu0
  %v1088 = vpop.f32.mrb[0].mxu0
  %v1089 = vadd.f32 0.0, %v1088
  %v1090 = vpop.f32.mrb[0].mxu0
  %1091 = vmatprep.mubr.bf16.mxu0 0
  %1092 = vmatmul.mubr.bf16.gmra.mrb[0].mxu0 %v1050
  %v1093 = vpop.f32.mrb[0].mxu0
  %v1094 = vadd.f32 0.0, %v1093
  %v1095 = vpop.f32.mrb[0].mxu0
  %v1096 = vpop.f32.mrb[0].mxu0
  %v1097 = vadd.f32 0.0, %v1096
  %v1098 = vpop.f32.mrb[0].mxu0
  %1099 = vdwg.mxu0
  %1100 = vmax.xlane.f32.xlu0 %v1086
  %v1101 = vpop.xlane.xlu0 %1100
  %1102 = vmax.xlane.f32.xlu0 %v1089
  %v1103 = vpop.xlane.xlu0 %1102
  %1104 = vmax.xlane.f32.xlu0 %v1094
  %v1105 = vpop.xlane.xlu0 %1104
  %1106 = vmax.xlane.f32.xlu0 %v1097
  %v1107 = vpop.xlane.xlu0 %1106
  %v1108 = vsub.f32 %v1086, %v1101
  %v1109 = vsub.f32 %v1089, %v1103
  %v1110 = vsub.f32 %v1094, %v1105
  %v1111 = vsub.f32 %v1097, %v1107
  %v1112 = vmul.f32 %v1108, 1.442695
  %v1113 = vpow.pop %v1112
  %v1114 = vmul.f32 %v1109, 1.442695
  %v1115 = vpow.pop %v1114
  %v1116 = vmul.f32 %v1110, 1.442695
  %v1117 = vpow.pop %v1116
  %v1118 = vmul.f32 %v1111, 1.442695
  %v1119 = vpow.pop %v1118
  %1120 = vadd.xlane.f32.xlu0 %v1113
  %v1121 = vpop.xlane.xlu0 %1120
  %1122 = vadd.xlane.f32.xlu0 %v1115
  %v1123 = vpop.xlane.xlu0 %1122
  %1124 = vadd.xlane.f32.xlu0 %v1117
  %v1125 = vpop.xlane.xlu0 %1124
  %1126 = vadd.xlane.f32.xlu0 %v1119
  %v1127 = vpop.xlane.xlu0 %1126
  %v1128 = vmul.f32 %v1121, 0.03125
  %v1129 = vmul.f32 %v1123, 0.03125
  %v1130 = vmul.f32 %v1125, 0.03125
  %v1131 = vmul.f32 %v1127, 0.03125
  %v1132 = vrcp.pop %v1128
  %v1133 = vmul.f32 %v1113, %v1132
  %v1134 = vrcp.pop %v1129
  %v1135 = vmul.f32 %v1115, %v1134
  %v1136 = vrcp.pop %v1130
  %v1137 = vmul.f32 %v1117, %v1136
  %v1138 = vrcp.pop %v1131
  %v1139 = vmul.f32 %v1119, %v1138
  %v1140 = vmul.f32 %v517, %v1133
  %v1141 = vmul.f32 %v518, %v1135
  %v1142 = vmul.f32 %v519, %v1137
  %v1143 = vmul.f32 %v520, %v1139
  %v1144 = vpack.c.bf16 %v1141, %v1140
  %v1145 = vpack.c.bf16 %v1143, %v1142
  %1146 = vmatprep.subr.bf16.mxu0 0
  %1147 = vmatpush1.bf16.msra.mxu0 %v1144
  %1148 = vmatprep.subr.bf16.mxu0 0
  %1149 = vmatpush1.bf16.msra.mxu0 %v1145
  %1150 = vmatprep.subr.bf16.mxu0 0
  %1151 = vmatpush1.bf16.msra.mxu0 0
  %1152 = vmatprep.subr.bf16.mxu0 0
  %1153 = vmatpush1.bf16.msra.mxu0 0
  %1154 = vmatprep.subr.bf16.mxu0 0
  %1155 = vmatpush1.bf16.msra.mxu0 0
  %1156 = vmatprep.subr.bf16.mxu0 0
  %1157 = vmatpush1.bf16.msra.mxu0 0
  %1158 = vmatprep.subr.bf16.mxu0 0
  %1159 = vmatpush1.bf16.msra.mxu0 0
  %1160 = vmatprep.subr.bf16.mxu0 0
  %1161 = vmatpush1.bf16.msra.mxu0 0
  %1162 = vmatprep.subr.bf16.mxu0 0
  %1163 = vmatpush1.bf16.msra.mxu0 0
  %1164 = vmatprep.subr.bf16.mxu0 0
  %1165 = vmatpush1.bf16.msra.mxu0 0
  %1166 = vmatprep.subr.bf16.mxu0 0
  %1167 = vmatpush1.bf16.msra.mxu0 0
  %1168 = vmatprep.subr.bf16.mxu0 0
  %1169 = vmatpush1.bf16.msra.mxu0 0
  %1170 = vmatprep.subr.bf16.mxu0 0
  %1171 = vmatpush1.bf16.msra.mxu0 0
  %1172 = vmatprep.subr.bf16.mxu0 0
  %1173 = vmatpush1.bf16.msra.mxu0 0
  %1174 = vmatprep.subr.bf16.mxu0 0
  %1175 = vmatpush1.bf16.msra.mxu0 0
  %1176 = vmatprep.subr.bf16.mxu0 0
  %1177 = vmatpush1.bf16.msra.mxu0 0
  %1178 = vmatprep.mubr.bf16.mxu0 0
  %1179 = vmatmul.mubr.bf16.gmra.mrb[0].mxu0 %v829
  %v1180 = vpop.f32.mrb[0].mxu0
  %v1181 = vadd.f32 1e-15, %v1180
  %v1182 = vpop.f32.mrb[0].mxu0
  %v1183 = vpop.f32.mrb[0].mxu0
  %v1184 = vadd.f32 1e-15, %v1183
  %v1185 = vpop.f32.mrb[0].mxu0
  %1186 = vdwg.mxu0
  %v1187 = vmul.f32 %v1181, %v1181
  %v1188 = vmul.f32 %v1184, %v1184
  %v1189 = vpack.c.bf16 %v1188, %v1187
  %1190 = vmatprep.subr.bf16.mxu0 0
  %1191 = vmatpush1.bf16.msra.mxu0 %v452
  %1192 = vmatprep.subr.bf16.mxu0 0
  %1193 = vmatpush1.bf16.msra.mxu0 %v453
  %1194 = vmatprep.subr.bf16.mxu0 0
  %1195 = vmatpush1.bf16.msra.mxu0 %v454
  %1196 = vmatprep.subr.bf16.mxu0 0
  %1197 = vmatpush1.bf16.msra.mxu0 %v455
  %1198 = vmatprep.subr.bf16.mxu0 0
  %1199 = vmatpush1.bf16.msra.mxu0 %v456
  %1200 = vmatprep.subr.bf16.mxu0 0
  %1201 = vmatpush1.bf16.msra.mxu0 %v457
  %1202 = vmatprep.subr.bf16.mxu0 0
  %1203 = vmatpush1.bf16.msra.mxu0 %v458
  %1204 = vmatprep.subr.bf16.mxu0 0
  %1205 = vmatpush1.bf16.msra.mxu0 %v459
  %1206 = vmatprep.subr.bf16.mxu0 0
  %1207 = vmatpush1.bf16.msra.mxu0 0
  %1208 = vmatprep.subr.bf16.mxu0 0
  %1209 = vmatpush1.bf16.msra.mxu0 0
  %1210 = vmatprep.subr.bf16.mxu0 0
  %1211 = vmatpush1.bf16.msra.mxu0 0
  %1212 = vmatprep.subr.bf16.mxu0 0
  %1213 = vmatpush1.bf16.msra.mxu0 0
  %1214 = vmatprep.subr.bf16.mxu0 0
  %1215 = vmatpush1.bf16.msra.mxu0 0
  %1216 = vmatprep.subr.bf16.mxu0 0
  %1217 = vmatpush1.bf16.msra.mxu0 0
  %1218 = vmatprep.subr.bf16.mxu0 0
  %1219 = vmatpush1.bf16.msra.mxu0 0
  %1220 = vmatprep.subr.bf16.mxu0 0
  %1221 = vmatpush1.bf16.msra.mxu0 0
  %1222 = vmatprep.mubr.bf16.mxu0 0
  %1223 = vmatmul.mubr.bf16.gmra.mrb[0].mxu0 %v1189
  %v1224 = vpop.f32.mrb[0].mxu0
  %v1225 = vadd.f32 0.0, %v1224
  %v1226 = vpop.f32.mrb[0].mxu0
  %v1227 = vpop.f32.mrb[0].mxu0
  %v1228 = vadd.f32 0.0, %v1227
  %v1229 = vpop.f32.mrb[0].mxu0
  %1230 = vdwg.mxu0
  %v1231 = vmax.f32 %v1225, 1e-24
  %v1232 = vmax.f32 %v1228, 1e-24
  %v1233 = vrsqrt.pop %v1231
  %v1234 = vrsqrt.pop %v1232
  %v1235 = vmul.f32 %v1181, %v1233
  %v1236 = vmul.f32 %v1184, %v1234
  %v1237 = vadd.f32 %v1235, %v1236
  %v1238 = vmul.f32 %v1237, 0.5
  %v1239 = vadd.f32 %v969, %v1238
  %v1240 = vmul.f32 %v1239, %v1239
  %v1241 = vpack.c.bf16 %v1240, %v1240
  %1242 = vmatprep.subr.bf16.mxu0 0
  %1243 = vmatpush1.bf16.msra.mxu0 %v452
  %1244 = vmatprep.subr.bf16.mxu0 0
  %1245 = vmatpush1.bf16.msra.mxu0 %v453
  %1246 = vmatprep.subr.bf16.mxu0 0
  %1247 = vmatpush1.bf16.msra.mxu0 %v454
  %1248 = vmatprep.subr.bf16.mxu0 0
  %1249 = vmatpush1.bf16.msra.mxu0 %v455
  %1250 = vmatprep.subr.bf16.mxu0 0
  %1251 = vmatpush1.bf16.msra.mxu0 %v456
  %1252 = vmatprep.subr.bf16.mxu0 0
  %1253 = vmatpush1.bf16.msra.mxu0 %v457
  %1254 = vmatprep.subr.bf16.mxu0 0
  %1255 = vmatpush1.bf16.msra.mxu0 %v458
  %1256 = vmatprep.subr.bf16.mxu0 0
  %1257 = vmatpush1.bf16.msra.mxu0 %v459
  %1258 = vmatprep.subr.bf16.mxu0 0
  %1259 = vmatpush1.bf16.msra.mxu0 0
  %1260 = vmatprep.subr.bf16.mxu0 0
  %1261 = vmatpush1.bf16.msra.mxu0 0
  %1262 = vmatprep.subr.bf16.mxu0 0
  %1263 = vmatpush1.bf16.msra.mxu0 0
  %1264 = vmatprep.subr.bf16.mxu0 0
  %1265 = vmatpush1.bf16.msra.mxu0 0
  %1266 = vmatprep.subr.bf16.mxu0 0
  %1267 = vmatpush1.bf16.msra.mxu0 0
  %1268 = vmatprep.subr.bf16.mxu0 0
  %1269 = vmatpush1.bf16.msra.mxu0 0
  %1270 = vmatprep.subr.bf16.mxu0 0
  %1271 = vmatpush1.bf16.msra.mxu0 0
  %1272 = vmatprep.subr.bf16.mxu0 0
  %1273 = vmatpush1.bf16.msra.mxu0 0
  %1274 = vmatprep.mubr.bf16.mxu0 0
  %1275 = vmatmul.mubr.bf16.gmra.mrb[0].mxu0 %v1241
  %v1276 = vpop.f32.mrb[0].mxu0
  %v1277 = vadd.f32 0.0, %v1276
  %v1278 = vpop.f32.mrb[0].mxu0
  %v1279 = vpop.f32.mrb[0].mxu0
  %v1280 = vpop.f32.mrb[0].mxu0
  %1281 = vdwg.mxu0
  %v1282 = vmax.f32 %v1277, 1e-24
  %v1283 = vrsqrt.pop %v1282
  %v1284 = vmul.f32 %v1239, %v1283
  %v1285 = vpack.c.bf16 %v1284, %v1284
  %v1287 = vsel %vm992, %v1285, 0
  %1289 = vmatprep.subr.bf16.mxu0 0
  %1290 = vmatpush1.bf16.msra.mxu0 %v1287
  %1291 = vmatprep.subr.bf16.mxu0 0
  %1292 = vmatpush1.bf16.msra.mxu0 0
  %1293 = vmatprep.subr.bf16.mxu0 0
  %1294 = vmatpush1.bf16.msra.mxu0 0
  %1295 = vmatprep.subr.bf16.mxu0 0
  %1296 = vmatpush1.bf16.msra.mxu0 0
  %1297 = vmatprep.subr.bf16.mxu0 0
  %1298 = vmatpush1.bf16.msra.mxu0 0
  %1299 = vmatprep.subr.bf16.mxu0 0
  %1300 = vmatpush1.bf16.msra.mxu0 0
  %1301 = vmatprep.subr.bf16.mxu0 0
  %1302 = vmatpush1.bf16.msra.mxu0 0
  %1303 = vmatprep.subr.bf16.mxu0 0
  %1304 = vmatpush1.bf16.msra.mxu0 0
  %1305 = vmatprep.subr.bf16.mxu0 0
  %1306 = vmatpush1.bf16.msra.mxu0 0
  %1307 = vmatprep.subr.bf16.mxu0 0
  %1308 = vmatpush1.bf16.msra.mxu0 0
  %1309 = vmatprep.subr.bf16.mxu0 0
  %1310 = vmatpush1.bf16.msra.mxu0 0
  %1311 = vmatprep.subr.bf16.mxu0 0
  %1312 = vmatpush1.bf16.msra.mxu0 0
  %1313 = vmatprep.subr.bf16.mxu0 0
  %1314 = vmatpush1.bf16.msra.mxu0 0
  %1315 = vmatprep.subr.bf16.mxu0 0
  %1316 = vmatpush1.bf16.msra.mxu0 0
  %1317 = vmatprep.subr.bf16.mxu0 0
  %1318 = vmatpush1.bf16.msra.mxu0 0
  %1319 = vmatprep.subr.bf16.mxu0 0
  %1320 = vmatpush1.bf16.msra.mxu0 0
  %1321 = vmatprep.mubr.bf16.mxu0 0
  %1322 = vmatmul.mubr.bf16.gmra.mrb[0].mxu0 %v987
  %v1323 = vpop.f32.mrb[0].mxu0
  %v1324 = vadd.f32 0.0, %v1323
  %v1325 = vpop.f32.mrb[0].mxu0
  %v1326 = vpop.f32.mrb[0].mxu0
  %v1327 = vadd.f32 0.0, %v1326
  %v1328 = vpop.f32.mrb[0].mxu0
  %1329 = vmatprep.mubr.bf16.mxu0 0
  %1330 = vmatmul.mubr.bf16.gmra.mrb[0].mxu0 %v990
  %v1331 = vpop.f32.mrb[0].mxu0
  %v1332 = vadd.f32 0.0, %v1331
  %v1333 = vpop.f32.mrb[0].mxu0
  %v1334 = vpop.f32.mrb[0].mxu0
  %v1335 = vadd.f32 0.0, %v1334
  %v1336 = vpop.f32.mrb[0].mxu0
  %1337 = vdwg.mxu0
  %v1338 = vmul.f32 %v517, %v1324
  %v1339 = vmul.f32 %v518, %v1327
  %v1340 = vmul.f32 %v519, %v1332
  %v1341 = vmul.f32 %v520, %v1335
  %v1342 = vpack.c.bf16 %v1339, %v1338
  %v1343 = vpack.c.bf16 %v1341, %v1340
  %1344 = vmatprep.subr.bf16.mxu0 0
  %1345 = vmatpush1.bf16.msra.mxu0 %v717
  %1346 = vmatprep.subr.bf16.mxu0 0
  %1347 = vmatpush1.bf16.msra.mxu0 %v718
  %1348 = vmatprep.subr.bf16.mxu0 0
  %1349 = vmatpush1.bf16.msra.mxu0 %v719
  %1350 = vmatprep.subr.bf16.mxu0 0
  %1351 = vmatpush1.bf16.msra.mxu0 %v720
  %1352 = vmatprep.subr.bf16.mxu0 0
  %1353 = vmatpush1.bf16.msra.mxu0 %v721
  %1354 = vmatprep.subr.bf16.mxu0 0
  %1355 = vmatpush1.bf16.msra.mxu0 %v722
  %1356 = vmatprep.subr.bf16.mxu0 0
  %1357 = vmatpush1.bf16.msra.mxu0 %v723
  %1358 = vmatprep.subr.bf16.mxu0 0
  %1359 = vmatpush1.bf16.msra.mxu0 %v724
  %1360 = vmatprep.subr.bf16.mxu0 0
  %1361 = vmatpush1.bf16.msra.mxu0 0
  %1362 = vmatprep.subr.bf16.mxu0 0
  %1363 = vmatpush1.bf16.msra.mxu0 0
  %1364 = vmatprep.subr.bf16.mxu0 0
  %1365 = vmatpush1.bf16.msra.mxu0 0
  %1366 = vmatprep.subr.bf16.mxu0 0
  %1367 = vmatpush1.bf16.msra.mxu0 0
  %1368 = vmatprep.subr.bf16.mxu0 0
  %1369 = vmatpush1.bf16.msra.mxu0 0
  %1370 = vmatprep.subr.bf16.mxu0 0
  %1371 = vmatpush1.bf16.msra.mxu0 0
  %1372 = vmatprep.subr.bf16.mxu0 0
  %1373 = vmatpush1.bf16.msra.mxu0 0
  %1374 = vmatprep.subr.bf16.mxu0 0
  %1375 = vmatpush1.bf16.msra.mxu0 0
  %1376 = vmatprep.mubr.bf16.mxu0 0
  %1377 = vmatmul.mubr.bf16.gmra.mrb[0].mxu0 %v1342
  %v1378 = vpop.f32.mrb[0].mxu0
  %v1379 = vadd.f32 0.0, %v1378
  %v1380 = vpop.f32.mrb[0].mxu0
  %v1381 = vpop.f32.mrb[0].mxu0
  %v1382 = vadd.f32 0.0, %v1381
  %v1383 = vpop.f32.mrb[0].mxu0
  %1384 = vmatprep.mubr.bf16.mxu0 0
  %1385 = vmatmul.mubr.bf16.gmra.mrb[0].mxu0 %v1343
  %v1386 = vpop.f32.mrb[0].mxu0
  %v1387 = vadd.f32 0.0, %v1386
  %v1388 = vpop.f32.mrb[0].mxu0
  %v1389 = vpop.f32.mrb[0].mxu0
  %v1390 = vadd.f32 0.0, %v1389
  %v1391 = vpop.f32.mrb[0].mxu0
  %1392 = vdwg.mxu0
  %1393 = vmax.xlane.f32.xlu0 %v1379
  %v1394 = vpop.xlane.xlu0 %1393
  %1395 = vmax.xlane.f32.xlu0 %v1382
  %v1396 = vpop.xlane.xlu0 %1395
  %1397 = vmax.xlane.f32.xlu0 %v1387
  %v1398 = vpop.xlane.xlu0 %1397
  %1399 = vmax.xlane.f32.xlu0 %v1390
  %v1400 = vpop.xlane.xlu0 %1399
  %v1401 = vsub.f32 %v1379, %v1394
  %v1402 = vsub.f32 %v1382, %v1396
  %v1403 = vsub.f32 %v1387, %v1398
  %v1404 = vsub.f32 %v1390, %v1400
  %v1405 = vmul.f32 %v1401, 1.442695
  %v1406 = vpow.pop %v1405
  %v1407 = vmul.f32 %v1402, 1.442695
  %v1408 = vpow.pop %v1407
  %v1409 = vmul.f32 %v1403, 1.442695
  %v1410 = vpow.pop %v1409
  %v1411 = vmul.f32 %v1404, 1.442695
  %v1412 = vpow.pop %v1411
  %1413 = vadd.xlane.f32.xlu0 %v1406
  %v1414 = vpop.xlane.xlu0 %1413
  %1415 = vadd.xlane.f32.xlu0 %v1408
  %v1416 = vpop.xlane.xlu0 %1415
  %1417 = vadd.xlane.f32.xlu0 %v1410
  %v1418 = vpop.xlane.xlu0 %1417
  %1419 = vadd.xlane.f32.xlu0 %v1412
  %v1420 = vpop.xlane.xlu0 %1419
  %v1421 = vmul.f32 %v1414, 0.03125
  %v1422 = vmul.f32 %v1416, 0.03125
  %v1423 = vmul.f32 %v1418, 0.03125
  %v1424 = vmul.f32 %v1420, 0.03125
  %v1425 = vrcp.pop %v1421
  %v1426 = vmul.f32 %v1406, %v1425
  %v1427 = vrcp.pop %v1422
  %v1428 = vmul.f32 %v1408, %v1427
  %v1429 = vrcp.pop %v1423
  %v1430 = vmul.f32 %v1410, %v1429
  %v1431 = vrcp.pop %v1424
  %v1432 = vmul.f32 %v1412, %v1431
  %1433 = vst [vmem:[%s7] sm:$0xff] %v1426
  %1434 = vst [vmem:[%s7 + $0x8] sm:$0xff] %v1428
  %1435 = vst [vmem:[%s7 + $0x10] sm:$0xff] %v1430
  %1436 = vst [vmem:[%s7 + $0x18] sm:$0xff] %v1432
  %v1437 = vmul.f32 %v517, %v1426
  %v1438 = vmul.f32 %v518, %v1428
  %v1439 = vmul.f32 %v519, %v1430
  %v1440 = vmul.f32 %v520, %v1432
  %v1441 = vld [vmem:[%s5] sm:$0xf]
  %v1442 = vld [vmem:[%s5 + $0x4] sm:$0xf]
  %v1443 = vpack.c.bf16 %v1438, %v1437
  %v1444 = vpack.c.bf16 %v1440, %v1439
  %v1447 = vunpack.c.l.b16 %v1441
  %v1448 = vunpack.c.l.b16 %v1442
  %v1449 = vpack.c.b16 %v1448, %v1447
  %v1451 = vsel %vm827, %v1449, 0
  %1453 = vmatprep.subr.bf16.mxu0 0
  %1454 = vmatpush1.bf16.msra.mxu0 %v1443
  %1455 = vmatprep.subr.bf16.mxu0 0
  %1456 = vmatpush1.bf16.msra.mxu0 %v1444
  %1457 = vmatprep.subr.bf16.mxu0 0
  %1458 = vmatpush1.bf16.msra.mxu0 0
  %1459 = vmatprep.subr.bf16.mxu0 0
  %1460 = vmatpush1.bf16.msra.mxu0 0
  %1461 = vmatprep.subr.bf16.mxu0 0
  %1462 = vmatpush1.bf16.msra.mxu0 0
  %1463 = vmatprep.subr.bf16.mxu0 0
  %1464 = vmatpush1.bf16.msra.mxu0 0
  %1465 = vmatprep.subr.bf16.mxu0 0
  %1466 = vmatpush1.bf16.msra.mxu0 0
  %1467 = vmatprep.subr.bf16.mxu0 0
  %1468 = vmatpush1.bf16.msra.mxu0 0
  %1469 = vmatprep.subr.bf16.mxu0 0
  %1470 = vmatpush1.bf16.msra.mxu0 0
  %1471 = vmatprep.subr.bf16.mxu0 0
  %1472 = vmatpush1.bf16.msra.mxu0 0
  %1473 = vmatprep.subr.bf16.mxu0 0
  %1474 = vmatpush1.bf16.msra.mxu0 0
  %1475 = vmatprep.subr.bf16.mxu0 0
  %1476 = vmatpush1.bf16.msra.mxu0 0
  %1477 = vmatprep.subr.bf16.mxu0 0
  %1478 = vmatpush1.bf16.msra.mxu0 0
  %1479 = vmatprep.subr.bf16.mxu0 0
  %1480 = vmatpush1.bf16.msra.mxu0 0
  %1481 = vmatprep.subr.bf16.mxu0 0
  %1482 = vmatpush1.bf16.msra.mxu0 0
  %1483 = vmatprep.subr.bf16.mxu0 0
  %1484 = vmatpush1.bf16.msra.mxu0 0
  %1485 = vmatprep.mubr.bf16.mxu0 0
  %1486 = vmatmul.mubr.bf16.gmra.mrb[0].mxu0 %v1451
  %v1487 = vpop.f32.mrb[0].mxu0
  %v1488 = vadd.f32 1e-15, %v1487
  %v1489 = vpop.f32.mrb[0].mxu0
  %v1490 = vpop.f32.mrb[0].mxu0
  %v1491 = vadd.f32 1e-15, %v1490
  %v1492 = vpop.f32.mrb[0].mxu0
  %1493 = vdwg.mxu0
  %v1494 = vmul.f32 %v1488, %v1488
  %v1495 = vmul.f32 %v1491, %v1491
  %v1496 = vpack.c.bf16 %v1495, %v1494
  %v1497 = vld [vmem:[#allocation3] sm:$0xff]
  %v1498 = vld [vmem:[#allocation3 + $0x8] sm:$0xff]
  %v1499 = vld [vmem:[#allocation3 + $0x10] sm:$0xff]
  %v1500 = vld [vmem:[#allocation3 + $0x18] sm:$0xff]
  %v1501 = vld [vmem:[#allocation3 + $0x20] sm:$0xff]
  %v1502 = vld [vmem:[#allocation3 + $0x28] sm:$0xff]
  %v1503 = vld [vmem:[#allocation3 + $0x30] sm:$0xff]
  %v1504 = vld [vmem:[#allocation3 + $0x38] sm:$0xff]
  %1505 = vmatprep.subr.bf16.mxu0 0
  %1506 = vmatpush1.bf16.msra.mxu0 %v1497
  %1507 = vmatprep.subr.bf16.mxu0 0
  %1508 = vmatpush1.bf16.msra.mxu0 %v1498
  %1509 = vmatprep.subr.bf16.mxu0 0
  %1510 = vmatpush1.bf16.msra.mxu0 %v1499
  %1511 = vmatprep.subr.bf16.mxu0 0
  %1512 = vmatpush1.bf16.msra.mxu0 %v1500
  %1513 = vmatprep.subr.bf16.mxu0 0
  %1514 = vmatpush1.bf16.msra.mxu0 %v1501
  %1515 = vmatprep.subr.bf16.mxu0 0
  %1516 = vmatpush1.bf16.msra.mxu0 %v1502
  %1517 = vmatprep.subr.bf16.mxu0 0
  %1518 = vmatpush1.bf16.msra.mxu0 %v1503
  %1519 = vmatprep.subr.bf16.mxu0 0
  %1520 = vmatpush1.bf16.msra.mxu0 %v1504
  %1521 = vmatprep.subr.bf16.mxu0 0
  %1522 = vmatpush1.bf16.msra.mxu0 0
  %1523 = vmatprep.subr.bf16.mxu0 0
  %1524 = vmatpush1.bf16.msra.mxu0 0
  %1525 = vmatprep.subr.bf16.mxu0 0
  %1526 = vmatpush1.bf16.msra.mxu0 0
  %1527 = vmatprep.subr.bf16.mxu0 0
  %1528 = vmatpush1.bf16.msra.mxu0 0
  %1529 = vmatprep.subr.bf16.mxu0 0
  %1530 = vmatpush1.bf16.msra.mxu0 0
  %1531 = vmatprep.subr.bf16.mxu0 0
  %1532 = vmatpush1.bf16.msra.mxu0 0
  %1533 = vmatprep.subr.bf16.mxu0 0
  %1534 = vmatpush1.bf16.msra.mxu0 0
  %1535 = vmatprep.subr.bf16.mxu0 0
  %1536 = vmatpush1.bf16.msra.mxu0 0
  %1537 = vmatprep.mubr.bf16.mxu0 0
  %1538 = vmatmul.mubr.bf16.gmra.mrb[0].mxu0 %v1496
  %v1539 = vpop.f32.mrb[0].mxu0
  %v1540 = vadd.f32 0.0, %v1539
  %v1541 = vpop.f32.mrb[0].mxu0
  %v1542 = vpop.f32.mrb[0].mxu0
  %v1543 = vadd.f32 0.0, %v1542
  %v1544 = vpop.f32.mrb[0].mxu0
  %1545 = vdwg.mxu0
  %v1546 = vmax.f32 %v1540, 1e-24
  %v1547 = vmax.f32 %v1543, 1e-24
  %v1548 = vrsqrt.pop %v1546
  %v1549 = vrsqrt.pop %v1547
  %v1550 = vmul.f32 %v1488, %v1548
  %v1551 = vmul.f32 %v1491, %v1549
  %v1552 = vadd.f32 %v1550, %v1551
  %v1553 = vmul.f32 %v1552, 0.5
  %v1554 = vadd.f32 %v1284, %v1553
  %v1555 = vmul.f32 %v1554, %v1554
  %v1556 = vpack.c.bf16 %v1555, %v1555
  %1557 = vmatprep.subr.bf16.mxu0 0
  %1558 = vmatpush1.bf16.msra.mxu0 %v1497
  %1559 = vmatprep.subr.bf16.mxu0 0
  %1560 = vmatpush1.bf16.msra.mxu0 %v1498
  %1561 = vmatprep.subr.bf16.mxu0 0
  %1562 = vmatpush1.bf16.msra.mxu0 %v1499
  %1563 = vmatprep.subr.bf16.mxu0 0
  %1564 = vmatpush1.bf16.msra.mxu0 %v1500
  %1565 = vmatprep.subr.bf16.mxu0 0
  %1566 = vmatpush1.bf16.msra.mxu0 %v1501
  %1567 = vmatprep.subr.bf16.mxu0 0
  %1568 = vmatpush1.bf16.msra.mxu0 %v1502
  %1569 = vmatprep.subr.bf16.mxu0 0
  %1570 = vmatpush1.bf16.msra.mxu0 %v1503
  %1571 = vmatprep.subr.bf16.mxu0 0
  %1572 = vmatpush1.bf16.msra.mxu0 %v1504
  %1573 = vmatprep.subr.bf16.mxu0 0
  %1574 = vmatpush1.bf16.msra.mxu0 0
  %1575 = vmatprep.subr.bf16.mxu0 0
  %1576 = vmatpush1.bf16.msra.mxu0 0
  %1577 = vmatprep.subr.bf16.mxu0 0
  %1578 = vmatpush1.bf16.msra.mxu0 0
  %1579 = vmatprep.subr.bf16.mxu0 0
  %1580 = vmatpush1.bf16.msra.mxu0 0
  %1581 = vmatprep.subr.bf16.mxu0 0
  %1582 = vmatpush1.bf16.msra.mxu0 0
  %1583 = vmatprep.subr.bf16.mxu0 0
  %1584 = vmatpush1.bf16.msra.mxu0 0
  %1585 = vmatprep.subr.bf16.mxu0 0
  %1586 = vmatpush1.bf16.msra.mxu0 0
  %1587 = vmatprep.subr.bf16.mxu0 0
  %1588 = vmatpush1.bf16.msra.mxu0 0
  %1589 = vmatprep.mubr.bf16.mxu0 0
  %1590 = vmatmul.mubr.bf16.gmra.mrb[0].mxu0 %v1556
  %v1591 = vpop.f32.mrb[0].mxu0
  %v1592 = vadd.f32 0.0, %v1591
  %v1593 = vpop.f32.mrb[0].mxu0
  %v1594 = vpop.f32.mrb[0].mxu0
  %v1595 = vpop.f32.mrb[0].mxu0
  %1596 = vdwg.mxu0
  %v1597 = vmax.f32 %v1592, 1e-24
  %v1598 = vrsqrt.pop %v1597
  %v1599 = vmul.f32 %v1554, %v1598
  %1600 = vst [vmem:[%s6] sm:$0xff] %v1599
  // Predicated region
  $region26: #{magnn_ctr_forward.1} parent=0 // pred_check
    _
  $region27: #{magnn_ctr_forward.1} parent=0 // pred_check_branch
    %1602 = sbr.rel (0) target = $region29
  $region28: #{magnn_ctr_forward.1} parent=0 // pred_region
    _
  $region29: #{magnn_ctr_forward.1} parent=0 // pred_fallthru
    _
  // Predicated region
  $region30: #{magnn_ctr_forward.1} parent=0 // pred_check
    _
  $region31: #{magnn_ctr_forward.1} parent=0 // pred_check_branch
    %1604 = sbr.rel (0) target = $region33
  $region32: #{magnn_ctr_forward.1} parent=0 // pred_region
    _
  $region33: #{magnn_ctr_forward.1} parent=0 // pred_fallthru
    _
  // Predicated region
  $region34: #{magnn_ctr_forward.1} parent=0 // pred_check
    _
  $region35: #{magnn_ctr_forward.1} parent=0 // pred_check_branch
    %1606 = sbr.rel (0) target = $region37
  $region36: #{magnn_ctr_forward.1} parent=0 // pred_region
    _
  $region37: #{magnn_ctr_forward.1} parent=0 // pred_fallthru
    _
  // Predicated region
  $region38: #{magnn_ctr_forward.1} parent=0 // pred_check
    _
  $region39: #{magnn_ctr_forward.1} parent=0 // pred_check_branch
    %1608 = sbr.rel (0) target = $region41
  $region40: #{magnn_ctr_forward.1} parent=0 // pred_region
    _
  $region41: #{magnn_ctr_forward.1} parent=0 // pred_fallthru
    _

</llo_original>
